<compile_context>
chip_gen: v5e
topology: v5e:2x2
jax: 0.10.0
libtpu: 0.0.40
codegen_flags: <defaults>
</compile_context>

<pallas_src>
import functools
import math

import jax
import jax.numpy as jnp
from jax import lax
from jax.experimental import pallas as pl
from jax.experimental.pallas import tpu as pltpu


def _round_up(x, m):
    return ((x + m - 1) // m) * m


def _bert_embeddings_kernel(ids_ref,                 # scalar prefetch: word ids (SMEM)
                            ttids_ref,               # (tm, 1) int32 token-type ids (VMEM)
                            wemb_hbm,                # (V, H) word table, HBM (pl.ANY)
                            pos_ref,                 # (tm, H) position rows for this tile
                            temb_ref,                # (T, H) token-type table (VMEM)
                            gamma_ref, beta_ref,     # (1, H) LayerNorm params (f32)
                            out_ref,                 # (tm, H) output tile
                            wbuf, sem,               # scratch: gather buffer + per-chunk sems
                            *, sigma, eps, seed, tm, n_chunks):
    i = pl.program_id(0)
    base = i * tm
    C = tm // n_chunks

    # ---- Issue ALL word-row gather DMAs up front; chunk c signals sem[c].
    #      Rows travel in the word table's native dtype (bf16 stays bf16).
    for c in range(n_chunks):                                     # static
        def _issue(j, carry, c=c):
            tok = ids_ref[base + c * C + j]
            pltpu.make_async_copy(wemb_hbm.at[pl.ds(tok, 1), :],
                                  wbuf.at[pl.ds(c * C + j, 1), :],
                                  sem.at[c]).start()
            return carry
        if C <= 32:                                               # full trace-time unroll
            for j in range(C):
                _issue(j, None)
        else:                                                     # partial unroll
            lax.fori_loop(0, C, _issue, None, unroll=8)

    gamma = gamma_ref[...]
    beta = beta_ref[...]
    tt_table = temb_ref[...].astype(jnp.float32)                  # tiny (T, H)
    n_types = tt_table.shape[0]

    if sigma != 0.0:
        # torch.randn_like equivalent via the TPU HW PRNG (not bitwise-
        # reproducible vs PyTorch).  Mix the grid index into the seed.
        pltpu.prng_seed(seed + i)

    # ---- Per chunk: wait for its gather, then fused add + LayerNorm + store.
    #      LayerNorm is per-token, so chunks are independent; compute on chunk
    #      c overlaps with the still-in-flight DMAs of chunks > c.
    for c in range(n_chunks):                                     # static
        rows = pl.ds(c * C, C)
        # Byte-counted wait: this descriptor has the same dtype and exactly the
        # total byte size (C rows x H) of the C single-row copies issued into
        # this chunk, and sem[c] is signalled only by those copies.
        pltpu.make_async_copy(wbuf.at[rows, :], wbuf.at[rows, :], sem.at[c]).wait()

        w = wbuf[rows, :].astype(jnp.float32)                     # (C, H)
        if sigma != 0.0:
            w = w + sigma * pltpu.stateful_normal(w.shape, jnp.float32)

        p = pos_ref[rows, :].astype(jnp.float32)                  # (C, H)
        tt = ttids_ref[rows, :]                                   # (C, 1) int32
        if n_types == 2:
            tt_e = jnp.where(tt == 0, tt_table[0:1, :], tt_table[1:2, :])
        else:
            tt_e = jnp.zeros_like(w)
            for t in range(n_types):                              # static, tiny T
                tt_e = tt_e + jnp.where(tt == t, tt_table[t:t + 1, :], 0.0)

        emb = w + p + tt_e
        mean = jnp.mean(emb, axis=-1, keepdims=True)
        var = jnp.mean(jnp.square(emb - mean), axis=-1, keepdims=True)
        normed = (emb - mean) * lax.rsqrt(var + eps)
        out_ref[rows, :] = (normed * gamma + beta).astype(out_ref.dtype)
    # Dropout: eval mode -> identity.


def bert_embeddings(input_ids, word_emb, pos_emb, tok_emb, ln_gamma, ln_beta,
                    token_type_ids=None, position_ids=None,
                    *, sigma=0.0, eps=1e-12, seed=0, tile_tokens=512):
    B, S = input_ids.shape
    V, H = word_emb.shape
    T = tok_emb.shape[0]
    BS = B * S
    emb_dtype = word_emb.dtype
    out_dtype = emb_dtype

    if token_type_ids is None:
        token_type_ids = jnp.zeros((B, S), jnp.int32)

    # ---- Choose the token tile and how the (tm, H) position slab is fed.
    canonical = position_ids is None
    pos_mode = None
    tm = 0
    if canonical:
        unit = (S * 8) // math.gcd(S, 8)              # lcm(S, 8): whole seqs, 8-aligned
        if unit <= 4096:
            # Tiles cover whole sequences -> every tile's position rows are the
            # same (tm, H) slab -> single resident VMEM block, zero gather DMAs.
            tm = max(unit, (tile_tokens // unit) * unit)
            tm = min(tm, _round_up(BS, unit))
            pos_mode = "repeat"
        elif S % 8 == 0:
            # Long sequence: a tile is a contiguous slice of one sequence ->
            # pipelined contiguous block straight out of the position table.
            cap = min(tile_tokens, S)
            for d in range(cap - cap % 8, 7, -8):
                if S % d == 0:
                    tm = d
                    break
            pos_mode = "slice" if tm else None
    if pos_mode is None:
        # Fallback: explicit / non-canonical position_ids -> gather the
        # position rows once in the wrapper and stream them as normal blocks.
        if position_ids is None:
            position_ids = jnp.broadcast_to(
                jnp.arange(S, dtype=jnp.int32)[None, :], (B, S))
        tm = min(_round_up(tile_tokens, 8), _round_up(BS, 8))
        pos_mode = "gathered"

    bs_pad = _round_up(BS, tm)
    n_tiles = bs_pad // tm

    # Split the gather into chunks (per-chunk DMA semaphores) so compute on an
    # early chunk overlaps the remaining in-flight row copies.
    n_chunks = 1
    for nc in (4, 2):
        if tm % (nc * 8) == 0:
            n_chunks = nc
            break

    # Scalar-prefetch word ids (SMEM), padded with 0 (a valid row index).
    ids = jnp.zeros((bs_pad,), jnp.int32).at[:BS].set(
        input_ids.reshape(-1).astype(jnp.int32))
    tts = jnp.zeros((bs_pad, 1), jnp.int32).at[:BS, 0].set(
        token_type_ids.reshape(-1).astype(jnp.int32))

    if pos_mode == "repeat":
        pos_in = jnp.tile(pos_emb[:S], (tm // S, 1))                 # (tm, H)
        pos_spec = pl.BlockSpec((tm, H), lambda i, ids: (0, 0))
    elif pos_mode == "slice":
        blocks_per_seq = S // tm
        pos_in = pos_emb                                             # (MAX_POS, H)
        pos_spec = pl.BlockSpec((tm, H),
                                lambda i, ids, n=blocks_per_seq: (i % n, 0))
    else:  # "gathered"
        pe = jnp.take(pos_emb, position_ids.reshape(-1).astype(jnp.int32), axis=0)
        pos_in = jnp.zeros((bs_pad, H), pos_emb.dtype).at[:BS].set(pe)
        pos_spec = pl.BlockSpec((tm, H), lambda i, ids: (i, 0))

    gamma2d = ln_gamma.reshape(1, H).astype(jnp.float32)
    beta2d = ln_beta.reshape(1, H).astype(jnp.float32)

    # VMEM budget: double-buffered output + resident/pipelined pos slab +
    # gather scratch + small tables; leave 2x headroom, cap well under physical.
    ebytes = emb_dtype.itemsize
    pbytes = pos_in.dtype.itemsize
    obytes = jnp.zeros((), out_dtype).dtype.itemsize
    vmem_est = (2 * tm * H * obytes + tm * H * ebytes + 2 * tm * H * pbytes
                + 2 * tm * 4 + T * H * ebytes + 2 * H * 4)
    vmem_limit = int(min(96 * 2**20, max(32 * 2**20, 2 * vmem_est)))

    kernel = functools.partial(_bert_embeddings_kernel,
                               sigma=float(sigma), eps=float(eps),
                               seed=int(seed), tm=tm, n_chunks=n_chunks)

    grid_spec = pltpu.PrefetchScalarGridSpec(
        num_scalar_prefetch=1,                                       # word ids -> SMEM
        grid=(n_tiles,),
        in_specs=[
            pl.BlockSpec((tm, 1), lambda i, ids: (i, 0)),            # token-type ids
            pl.BlockSpec(memory_space=pl.ANY),                       # word table (HBM)
            pos_spec,                                                # position rows
            pl.BlockSpec((T, H), lambda i, ids: (0, 0)),             # token-type table
            pl.BlockSpec((1, H), lambda i, ids: (0, 0)),             # LN gamma
            pl.BlockSpec((1, H), lambda i, ids: (0, 0)),             # LN beta
        ],
        out_specs=pl.BlockSpec((tm, H), lambda i, ids: (i, 0)),
        scratch_shapes=[
            pltpu.VMEM((tm, H), emb_dtype),                          # gathered word rows
            pltpu.SemaphoreType.DMA((n_chunks,)),                    # per-chunk gather sems
        ],
    )

    out = pl.pallas_call(
        kernel,
        out_shape=jax.ShapeDtypeStruct((bs_pad, H), out_dtype),
        grid_spec=grid_spec,
        compiler_params=pltpu.CompilerParams(
            dimension_semantics=("parallel",),
            vmem_limit_bytes=vmem_limit),
    )(ids, tts, word_emb, pos_in, tok_emb, gamma2d, beta2d)

    return out[:BS].reshape(B, S, H)


def _reference(input_ids, token_type_ids, position_ids,
               word_emb, pos_emb, tok_emb, ln_gamma, ln_beta, eps):
    we = word_emb[input_ids].astype(jnp.float32)
    pe = pos_emb[position_ids].astype(jnp.float32)
    te = tok_emb[token_type_ids].astype(jnp.float32)
    emb = we + pe + te
    mean = jnp.mean(emb, axis=-1, keepdims=True)
    var = jnp.mean((emb - mean) ** 2, axis=-1, keepdims=True)
    normed = (emb - mean) / jnp.sqrt(var + eps)
    return normed * ln_gamma + ln_beta


if __name__ == "__main__":
    # Small synthetic config: vocab=128, max_pos=16, type_vocab=2, hidden=32
    VOCAB, MAX_POS, TYPE_VOCAB, HIDDEN = 128, 16, 2, 32
    PAD_TOKEN_ID = 0
    EPS = 1e-12
    B, S = 2, 8

    key = jax.random.PRNGKey(0)
    k_w, k_p, k_t, k_ids = jax.random.split(key, 4)

    word_emb = 0.02 * jax.random.normal(k_w, (VOCAB, HIDDEN), jnp.float32)
    word_emb = word_emb.at[PAD_TOKEN_ID].set(0.0)   # padding_idx row zeroed at init
    pos_emb = 0.02 * jax.random.normal(k_p, (MAX_POS, HIDDEN), jnp.float32)
    tok_emb = 0.02 * jax.random.normal(k_t, (TYPE_VOCAB, HIDDEN), jnp.float32)
    ln_gamma = jnp.ones((HIDDEN,), jnp.float32)
    ln_beta = jnp.zeros((HIDDEN,), jnp.float32)

    input_ids = jax.random.randint(k_ids, (B, S), 0, VOCAB, dtype=jnp.int32)
    # Mixed segments so the token-type select path is exercised.
    token_type_ids = jnp.broadcast_to(
        (jnp.arange(S, dtype=jnp.int32) >= S // 2).astype(jnp.int32)[None, :], (B, S))
    canon_pos = jnp.broadcast_to(jnp.arange(S, dtype=jnp.int32)[None, :], (B, S))

    # 1) Canonical positions (position_ids=None): resident position slab,
    #    whole-sequence tile (tm=16), 2 gather chunks, single grid step.
    out = bert_embeddings(input_ids, word_emb, pos_emb, tok_emb, ln_gamma, ln_beta,
                          token_type_ids=token_type_ids, position_ids=None,
                          sigma=0.0, eps=EPS)
    out = jax.block_until_ready(out)
    ref = _reference(input_ids, token_type_ids, canon_pos,
                     word_emb, pos_emb, tok_emb, ln_gamma, ln_beta, EPS)
    assert out.shape == (B, S, HIDDEN)
    assert jnp.allclose(out, ref, atol=1e-5, rtol=1e-5), "mismatch (canonical positions)"

    # 2) Explicit (non-canonical) position_ids: gathered-slab fallback, 2 tiles.
    rev_pos = jnp.broadcast_to(
        jnp.arange(S - 1, -1, -1, dtype=jnp.int32)[None, :], (B, S))
    out2 = bert_embeddings(input_ids, word_emb, pos_emb, tok_emb, ln_gamma, ln_beta,
                           token_type_ids=token_type_ids, position_ids=rev_pos,
                           sigma=0.0, eps=EPS, tile_tokens=8)
    out2 = jax.block_until_ready(out2)
    ref2 = _reference(input_ids, token_type_ids, rev_pos,
                      word_emb, pos_emb, tok_emb, ln_gamma, ln_beta, EPS)
    assert jnp.allclose(out2, ref2, atol=1e-5, rtol=1e-5), "mismatch (explicit positions)"

    print("KERNEL_OK")
</pallas_src>

<mosaic_0001>
module attributes {stable_mosaic.version = 11 : i64} {
  func.func @_bert_embeddings_kernel(%arg0: i32, %arg1: memref<16xi32, #tpu.memory_space<smem>>, %arg2: memref<16x1xi32, #tpu.memory_space<vmem>>, %arg3: memref<128x32xf32, #tpu.memory_space<any>>, %arg4: memref<16x32xf32, #tpu.memory_space<vmem>>, %arg5: memref<2x32xf32, #tpu.memory_space<vmem>>, %arg6: memref<1x32xf32, #tpu.memory_space<vmem>>, %arg7: memref<1x32xf32, #tpu.memory_space<vmem>>, %arg8: memref<16x32xf32, #tpu.memory_space<vmem>>, %arg9: memref<16x32xf32, #tpu.memory_space<vmem>>, %arg10: memref<2x!tpu.dma_semaphore, #tpu.memory_space<semaphore_mem>>) attributes {dimension_semantics = [#tpu.dimension_semantics<parallel>], iteration_bounds = array<i64: 1>, scalar_prefetch = 1 : i64, scratch_operands = 2 : i64, tpu.core_type = #tpu.core_type<tc>, window_params = [{transform_indices = @transform_0, window_bounds = array<i64: 16, 1>}, {}, {pipeline_mode = #tpu.pipeline_mode<synchronous>, transform_indices = @transform_2, window_bounds = array<i64: 16, 32>}, {pipeline_mode = #tpu.pipeline_mode<synchronous>, transform_indices = @transform_3, window_bounds = array<i64: 2, 32>}, {pipeline_mode = #tpu.pipeline_mode<synchronous>, transform_indices = @transform_4, window_bounds = array<i64: 1, 32>}, {pipeline_mode = #tpu.pipeline_mode<synchronous>, transform_indices = @transform_5, window_bounds = array<i64: 1, 32>}, {transform_indices = @transform_6, window_bounds = array<i64: 16, 32>}]} {
    %c16_i32 = arith.constant 16 : i32
    %0 = arith.muli %arg0, %c16_i32 : i32
    %c0_i32 = arith.constant 0 : i32
    %1 = arith.addi %0, %c0_i32 : i32
    %c0_i32_0 = arith.constant 0 : i32
    %2 = arith.addi %1, %c0_i32_0 : i32
    %3 = arith.index_cast %2 : i32 to index
    %4 = memref.load %arg1[%3] : memref<16xi32, #tpu.memory_space<smem>>
    %c0_i32_1 = arith.constant 0 : i32
    %c0_i32_2 = arith.constant 0 : i32
    %5 = tpu.memref_slice %arg3[%4, %c0_i32_2] : memref<128x32xf32, #tpu.memory_space<any>> -> memref<1x32xf32, #tpu.memory_space<any>>
    %c0_i32_3 = arith.constant 0 : i32
    %c0_i32_4 = arith.constant 0 : i32
    %6 = tpu.memref_slice %arg9[%c0_i32_3, %c0_i32_4] : memref<16x32xf32, #tpu.memory_space<vmem>> -> memref<1x32xf32, #tpu.memory_space<vmem>>
    %7 = tpu.memref_slice %arg10[%c0_i32_1] : memref<2x!tpu.dma_semaphore, #tpu.memory_space<semaphore_mem>> -> memref<1x!tpu.dma_semaphore, #tpu.memory_space<semaphore_mem>>
    %8 = tpu.memref_squeeze %7 : memref<1x!tpu.dma_semaphore, #tpu.memory_space<semaphore_mem>> -> memref<!tpu.dma_semaphore, #tpu.memory_space<semaphore_mem>>
    tpu.enqueue_dma source(%5 : memref<1x32xf32, #tpu.memory_space<any>>) target(%6 : memref<1x32xf32, #tpu.memory_space<vmem>>) target_semaphore(%8 : memref<!tpu.dma_semaphore, #tpu.memory_space<semaphore_mem>>)
    %c0_i32_5 = arith.constant 0 : i32
    %9 = arith.addi %0, %c0_i32_5 : i32
    %c1_i32 = arith.constant 1 : i32
    %10 = arith.addi %9, %c1_i32 : i32
    %11 = arith.index_cast %10 : i32 to index
    %12 = memref.load %arg1[%11] : memref<16xi32, #tpu.memory_space<smem>>
    %c0_i32_6 = arith.constant 0 : i32
    %c0_i32_7 = arith.constant 0 : i32
    %13 = tpu.memref_slice %arg3[%12, %c0_i32_7] : memref<128x32xf32, #tpu.memory_space<any>> -> memref<1x32xf32, #tpu.memory_space<any>>
    %c1_i32_8 = arith.constant 1 : i32
    %c0_i32_9 = arith.constant 0 : i32
    %14 = tpu.memref_slice %arg9[%c1_i32_8, %c0_i32_9] : memref<16x32xf32, #tpu.memory_space<vmem>> -> memref<1x32xf32, #tpu.memory_space<vmem>>
    %15 = tpu.memref_slice %arg10[%c0_i32_6] : memref<2x!tpu.dma_semaphore, #tpu.memory_space<semaphore_mem>> -> memref<1x!tpu.dma_semaphore, #tpu.memory_space<semaphore_mem>>
    %16 = tpu.memref_squeeze %15 : memref<1x!tpu.dma_semaphore, #tpu.memory_space<semaphore_mem>> -> memref<!tpu.dma_semaphore, #tpu.memory_space<semaphore_mem>>
    tpu.enqueue_dma source(%13 : memref<1x32xf32, #tpu.memory_space<any>>) target(%14 : memref<1x32xf32, #tpu.memory_space<vmem>>) target_semaphore(%16 : memref<!tpu.dma_semaphore, #tpu.memory_space<semaphore_mem>>)
    %c0_i32_10 = arith.constant 0 : i32
    %17 = arith.addi %0, %c0_i32_10 : i32
    %c2_i32 = arith.constant 2 : i32
    %18 = arith.addi %17, %c2_i32 : i32
    %19 = arith.index_cast %18 : i32 to index
    %20 = memref.load %arg1[%19] : memref<16xi32, #tpu.memory_space<smem>>
    %c0_i32_11 = arith.constant 0 : i32
    %c0_i32_12 = arith.constant 0 : i32
    %21 = tpu.memref_slice %arg3[%20, %c0_i32_12] : memref<128x32xf32, #tpu.memory_space<any>> -> memref<1x32xf32, #tpu.memory_space<any>>
    %c2_i32_13 = arith.constant 2 : i32
    %c0_i32_14 = arith.constant 0 : i32
    %22 = tpu.memref_slice %arg9[%c2_i32_13, %c0_i32_14] : memref<16x32xf32, #tpu.memory_space<vmem>> -> memref<1x32xf32, #tpu.memory_space<vmem>>
    %23 = tpu.memref_slice %arg10[%c0_i32_11] : memref<2x!tpu.dma_semaphore, #tpu.memory_space<semaphore_mem>> -> memref<1x!tpu.dma_semaphore, #tpu.memory_space<semaphore_mem>>
    %24 = tpu.memref_squeeze %23 : memref<1x!tpu.dma_semaphore, #tpu.memory_space<semaphore_mem>> -> memref<!tpu.dma_semaphore, #tpu.memory_space<semaphore_mem>>
    tpu.enqueue_dma source(%21 : memref<1x32xf32, #tpu.memory_space<any>>) target(%22 : memref<1x32xf32, #tpu.memory_space<vmem>>) target_semaphore(%24 : memref<!tpu.dma_semaphore, #tpu.memory_space<semaphore_mem>>)
    %c0_i32_15 = arith.constant 0 : i32
    %25 = arith.addi %0, %c0_i32_15 : i32
    %c3_i32 = arith.constant 3 : i32
    %26 = arith.addi %25, %c3_i32 : i32
    %27 = arith.index_cast %26 : i32 to index
    %28 = memref.load %arg1[%27] : memref<16xi32, #tpu.memory_space<smem>>
    %c0_i32_16 = arith.constant 0 : i32
    %c0_i32_17 = arith.constant 0 : i32
    %29 = tpu.memref_slice %arg3[%28, %c0_i32_17] : memref<128x32xf32, #tpu.memory_space<any>> -> memref<1x32xf32, #tpu.memory_space<any>>
    %c3_i32_18 = arith.constant 3 : i32
    %c0_i32_19 = arith.constant 0 : i32
    %30 = tpu.memref_slice %arg9[%c3_i32_18, %c0_i32_19] : memref<16x32xf32, #tpu.memory_space<vmem>> -> memref<1x32xf32, #tpu.memory_space<vmem>>
    %31 = tpu.memref_slice %arg10[%c0_i32_16] : memref<2x!tpu.dma_semaphore, #tpu.memory_space<semaphore_mem>> -> memref<1x!tpu.dma_semaphore, #tpu.memory_space<semaphore_mem>>
    %32 = tpu.memref_squeeze %31 : memref<1x!tpu.dma_semaphore, #tpu.memory_space<semaphore_mem>> -> memref<!tpu.dma_semaphore, #tpu.memory_space<semaphore_mem>>
    tpu.enqueue_dma source(%29 : memref<1x32xf32, #tpu.memory_space<any>>) target(%30 : memref<1x32xf32, #tpu.memory_space<vmem>>) target_semaphore(%32 : memref<!tpu.dma_semaphore, #tpu.memory_space<semaphore_mem>>)
    %c0_i32_20 = arith.constant 0 : i32
    %33 = arith.addi %0, %c0_i32_20 : i32
    %c4_i32 = arith.constant 4 : i32
    %34 = arith.addi %33, %c4_i32 : i32
    %35 = arith.index_cast %34 : i32 to index
    %36 = memref.load %arg1[%35] : memref<16xi32, #tpu.memory_space<smem>>
    %c0_i32_21 = arith.constant 0 : i32
    %c0_i32_22 = arith.constant 0 : i32
    %37 = tpu.memref_slice %arg3[%36, %c0_i32_22] : memref<128x32xf32, #tpu.memory_space<any>> -> memref<1x32xf32, #tpu.memory_space<any>>
    %c4_i32_23 = arith.constant 4 : i32
    %c0_i32_24 = arith.constant 0 : i32
    %38 = tpu.memref_slice %arg9[%c4_i32_23, %c0_i32_24] : memref<16x32xf32, #tpu.memory_space<vmem>> -> memref<1x32xf32, #tpu.memory_space<vmem>>
    %39 = tpu.memref_slice %arg10[%c0_i32_21] : memref<2x!tpu.dma_semaphore, #tpu.memory_space<semaphore_mem>> -> memref<1x!tpu.dma_semaphore, #tpu.memory_space<semaphore_mem>>
    %40 = tpu.memref_squeeze %39 : memref<1x!tpu.dma_semaphore, #tpu.memory_space<semaphore_mem>> -> memref<!tpu.dma_semaphore, #tpu.memory_space<semaphore_mem>>
    tpu.enqueue_dma source(%37 : memref<1x32xf32, #tpu.memory_space<any>>) target(%38 : memref<1x32xf32, #tpu.memory_space<vmem>>) target_semaphore(%40 : memref<!tpu.dma_semaphore, #tpu.memory_space<semaphore_mem>>)
    %c0_i32_25 = arith.constant 0 : i32
    %41 = arith.addi %0, %c0_i32_25 : i32
    %c5_i32 = arith.constant 5 : i32
    %42 = arith.addi %41, %c5_i32 : i32
    %43 = arith.index_cast %42 : i32 to index
    %44 = memref.load %arg1[%43] : memref<16xi32, #tpu.memory_space<smem>>
    %c0_i32_26 = arith.constant 0 : i32
    %c0_i32_27 = arith.constant 0 : i32
    %45 = tpu.memref_slice %arg3[%44, %c0_i32_27] : memref<128x32xf32, #tpu.memory_space<any>> -> memref<1x32xf32, #tpu.memory_space<any>>
    %c5_i32_28 = arith.constant 5 : i32
    %c0_i32_29 = arith.constant 0 : i32
    %46 = tpu.memref_slice %arg9[%c5_i32_28, %c0_i32_29] : memref<16x32xf32, #tpu.memory_space<vmem>> -> memref<1x32xf32, #tpu.memory_space<vmem>>
    %47 = tpu.memref_slice %arg10[%c0_i32_26] : memref<2x!tpu.dma_semaphore, #tpu.memory_space<semaphore_mem>> -> memref<1x!tpu.dma_semaphore, #tpu.memory_space<semaphore_mem>>
    %48 = tpu.memref_squeeze %47 : memref<1x!tpu.dma_semaphore, #tpu.memory_space<semaphore_mem>> -> memref<!tpu.dma_semaphore, #tpu.memory_space<semaphore_mem>>
    tpu.enqueue_dma source(%45 : memref<1x32xf32, #tpu.memory_space<any>>) target(%46 : memref<1x32xf32, #tpu.memory_space<vmem>>) target_semaphore(%48 : memref<!tpu.dma_semaphore, #tpu.memory_space<semaphore_mem>>)
    %c0_i32_30 = arith.constant 0 : i32
    %49 = arith.addi %0, %c0_i32_30 : i32
    %c6_i32 = arith.constant 6 : i32
    %50 = arith.addi %49, %c6_i32 : i32
    %51 = arith.index_cast %50 : i32 to index
    %52 = memref.load %arg1[%51] : memref<16xi32, #tpu.memory_space<smem>>
    %c0_i32_31 = arith.constant 0 : i32
    %c0_i32_32 = arith.constant 0 : i32
    %53 = tpu.memref_slice %arg3[%52, %c0_i32_32] : memref<128x32xf32, #tpu.memory_space<any>> -> memref<1x32xf32, #tpu.memory_space<any>>
    %c6_i32_33 = arith.constant 6 : i32
    %c0_i32_34 = arith.constant 0 : i32
    %54 = tpu.memref_slice %arg9[%c6_i32_33, %c0_i32_34] : memref<16x32xf32, #tpu.memory_space<vmem>> -> memref<1x32xf32, #tpu.memory_space<vmem>>
    %55 = tpu.memref_slice %arg10[%c0_i32_31] : memref<2x!tpu.dma_semaphore, #tpu.memory_space<semaphore_mem>> -> memref<1x!tpu.dma_semaphore, #tpu.memory_space<semaphore_mem>>
    %56 = tpu.memref_squeeze %55 : memref<1x!tpu.dma_semaphore, #tpu.memory_space<semaphore_mem>> -> memref<!tpu.dma_semaphore, #tpu.memory_space<semaphore_mem>>
    tpu.enqueue_dma source(%53 : memref<1x32xf32, #tpu.memory_space<any>>) target(%54 : memref<1x32xf32, #tpu.memory_space<vmem>>) target_semaphore(%56 : memref<!tpu.dma_semaphore, #tpu.memory_space<semaphore_mem>>)
    %c0_i32_35 = arith.constant 0 : i32
    %57 = arith.addi %0, %c0_i32_35 : i32
    %c7_i32 = arith.constant 7 : i32
    %58 = arith.addi %57, %c7_i32 : i32
    %59 = arith.index_cast %58 : i32 to index
    %60 = memref.load %arg1[%59] : memref<16xi32, #tpu.memory_space<smem>>
    %c0_i32_36 = arith.constant 0 : i32
    %c0_i32_37 = arith.constant 0 : i32
    %61 = tpu.memref_slice %arg3[%60, %c0_i32_37] : memref<128x32xf32, #tpu.memory_space<any>> -> memref<1x32xf32, #tpu.memory_space<any>>
    %c7_i32_38 = arith.constant 7 : i32
    %c0_i32_39 = arith.constant 0 : i32
    %62 = tpu.memref_slice %arg9[%c7_i32_38, %c0_i32_39] : memref<16x32xf32, #tpu.memory_space<vmem>> -> memref<1x32xf32, #tpu.memory_space<vmem>>
    %63 = tpu.memref_slice %arg10[%c0_i32_36] : memref<2x!tpu.dma_semaphore, #tpu.memory_space<semaphore_mem>> -> memref<1x!tpu.dma_semaphore, #tpu.memory_space<semaphore_mem>>
    %64 = tpu.memref_squeeze %63 : memref<1x!tpu.dma_semaphore, #tpu.memory_space<semaphore_mem>> -> memref<!tpu.dma_semaphore, #tpu.memory_space<semaphore_mem>>
    tpu.enqueue_dma source(%61 : memref<1x32xf32, #tpu.memory_space<any>>) target(%62 : memref<1x32xf32, #tpu.memory_space<vmem>>) target_semaphore(%64 : memref<!tpu.dma_semaphore, #tpu.memory_space<semaphore_mem>>)
    %c8_i32 = arith.constant 8 : i32
    %65 = arith.addi %0, %c8_i32 : i32
    %c0_i32_40 = arith.constant 0 : i32
    %66 = arith.addi %65, %c0_i32_40 : i32
    %67 = arith.index_cast %66 : i32 to index
    %68 = memref.load %arg1[%67] : memref<16xi32, #tpu.memory_space<smem>>
    %c1_i32_41 = arith.constant 1 : i32
    %c0_i32_42 = arith.constant 0 : i32
    %69 = tpu.memref_slice %arg3[%68, %c0_i32_42] : memref<128x32xf32, #tpu.memory_space<any>> -> memref<1x32xf32, #tpu.memory_space<any>>
    %c8_i32_43 = arith.constant 8 : i32
    %c0_i32_44 = arith.constant 0 : i32
    %70 = tpu.memref_slice %arg9[%c8_i32_43, %c0_i32_44] : memref<16x32xf32, #tpu.memory_space<vmem>> -> memref<1x32xf32, #tpu.memory_space<vmem>>
    %71 = tpu.memref_slice %arg10[%c1_i32_41] : memref<2x!tpu.dma_semaphore, #tpu.memory_space<semaphore_mem>> -> memref<1x!tpu.dma_semaphore, #tpu.memory_space<semaphore_mem>>
    %72 = tpu.memref_squeeze %71 : memref<1x!tpu.dma_semaphore, #tpu.memory_space<semaphore_mem>> -> memref<!tpu.dma_semaphore, #tpu.memory_space<semaphore_mem>>
    tpu.enqueue_dma source(%69 : memref<1x32xf32, #tpu.memory_space<any>>) target(%70 : memref<1x32xf32, #tpu.memory_space<vmem>>) target_semaphore(%72 : memref<!tpu.dma_semaphore, #tpu.memory_space<semaphore_mem>>)
    %c8_i32_45 = arith.constant 8 : i32
    %73 = arith.addi %0, %c8_i32_45 : i32
    %c1_i32_46 = arith.constant 1 : i32
    %74 = arith.addi %73, %c1_i32_46 : i32
    %75 = arith.index_cast %74 : i32 to index
    %76 = memref.load %arg1[%75] : memref<16xi32, #tpu.memory_space<smem>>
    %c1_i32_47 = arith.constant 1 : i32
    %c0_i32_48 = arith.constant 0 : i32
    %77 = tpu.memref_slice %arg3[%76, %c0_i32_48] : memref<128x32xf32, #tpu.memory_space<any>> -> memref<1x32xf32, #tpu.memory_space<any>>
    %c9_i32 = arith.constant 9 : i32
    %c0_i32_49 = arith.constant 0 : i32
    %78 = tpu.memref_slice %arg9[%c9_i32, %c0_i32_49] : memref<16x32xf32, #tpu.memory_space<vmem>> -> memref<1x32xf32, #tpu.memory_space<vmem>>
    %79 = tpu.memref_slice %arg10[%c1_i32_47] : memref<2x!tpu.dma_semaphore, #tpu.memory_space<semaphore_mem>> -> memref<1x!tpu.dma_semaphore, #tpu.memory_space<semaphore_mem>>
    %80 = tpu.memref_squeeze %79 : memref<1x!tpu.dma_semaphore, #tpu.memory_space<semaphore_mem>> -> memref<!tpu.dma_semaphore, #tpu.memory_space<semaphore_mem>>
    tpu.enqueue_dma source(%77 : memref<1x32xf32, #tpu.memory_space<any>>) target(%78 : memref<1x32xf32, #tpu.memory_space<vmem>>) target_semaphore(%80 : memref<!tpu.dma_semaphore, #tpu.memory_space<semaphore_mem>>)
    %c8_i32_50 = arith.constant 8 : i32
    %81 = arith.addi %0, %c8_i32_50 : i32
    %c2_i32_51 = arith.constant 2 : i32
    %82 = arith.addi %81, %c2_i32_51 : i32
    %83 = arith.index_cast %82 : i32 to index
    %84 = memref.load %arg1[%83] : memref<16xi32, #tpu.memory_space<smem>>
    %c1_i32_52 = arith.constant 1 : i32
    %c0_i32_53 = arith.constant 0 : i32
    %85 = tpu.memref_slice %arg3[%84, %c0_i32_53] : memref<128x32xf32, #tpu.memory_space<any>> -> memref<1x32xf32, #tpu.memory_space<any>>
    %c10_i32 = arith.constant 10 : i32
    %c0_i32_54 = arith.constant 0 : i32
    %86 = tpu.memref_slice %arg9[%c10_i32, %c0_i32_54] : memref<16x32xf32, #tpu.memory_space<vmem>> -> memref<1x32xf32, #tpu.memory_space<vmem>>
    %87 = tpu.memref_slice %arg10[%c1_i32_52] : memref<2x!tpu.dma_semaphore, #tpu.memory_space<semaphore_mem>> -> memref<1x!tpu.dma_semaphore, #tpu.memory_space<semaphore_mem>>
    %88 = tpu.memref_squeeze %87 : memref<1x!tpu.dma_semaphore, #tpu.memory_space<semaphore_mem>> -> memref<!tpu.dma_semaphore, #tpu.memory_space<semaphore_mem>>
    tpu.enqueue_dma source(%85 : memref<1x32xf32, #tpu.memory_space<any>>) target(%86 : memref<1x32xf32, #tpu.memory_space<vmem>>) target_semaphore(%88 : memref<!tpu.dma_semaphore, #tpu.memory_space<semaphore_mem>>)
    %c8_i32_55 = arith.constant 8 : i32
    %89 = arith.addi %0, %c8_i32_55 : i32
    %c3_i32_56 = arith.constant 3 : i32
    %90 = arith.addi %89, %c3_i32_56 : i32
    %91 = arith.index_cast %90 : i32 to index
    %92 = memref.load %arg1[%91] : memref<16xi32, #tpu.memory_space<smem>>
    %c1_i32_57 = arith.constant 1 : i32
    %c0_i32_58 = arith.constant 0 : i32
    %93 = tpu.memref_slice %arg3[%92, %c0_i32_58] : memref<128x32xf32, #tpu.memory_space<any>> -> memref<1x32xf32, #tpu.memory_space<any>>
    %c11_i32 = arith.constant 11 : i32
    %c0_i32_59 = arith.constant 0 : i32
    %94 = tpu.memref_slice %arg9[%c11_i32, %c0_i32_59] : memref<16x32xf32, #tpu.memory_space<vmem>> -> memref<1x32xf32, #tpu.memory_space<vmem>>
    %95 = tpu.memref_slice %arg10[%c1_i32_57] : memref<2x!tpu.dma_semaphore, #tpu.memory_space<semaphore_mem>> -> memref<1x!tpu.dma_semaphore, #tpu.memory_space<semaphore_mem>>
    %96 = tpu.memref_squeeze %95 : memref<1x!tpu.dma_semaphore, #tpu.memory_space<semaphore_mem>> -> memref<!tpu.dma_semaphore, #tpu.memory_space<semaphore_mem>>
    tpu.enqueue_dma source(%93 : memref<1x32xf32, #tpu.memory_space<any>>) target(%94 : memref<1x32xf32, #tpu.memory_space<vmem>>) target_semaphore(%96 : memref<!tpu.dma_semaphore, #tpu.memory_space<semaphore_mem>>)
    %c8_i32_60 = arith.constant 8 : i32
    %97 = arith.addi %0, %c8_i32_60 : i32
    %c4_i32_61 = arith.constant 4 : i32
    %98 = arith.addi %97, %c4_i32_61 : i32
    %99 = arith.index_cast %98 : i32 to index
    %100 = memref.load %arg1[%99] : memref<16xi32, #tpu.memory_space<smem>>
    %c1_i32_62 = arith.constant 1 : i32
    %c0_i32_63 = arith.constant 0 : i32
    %101 = tpu.memref_slice %arg3[%100, %c0_i32_63] : memref<128x32xf32, #tpu.memory_space<any>> -> memref<1x32xf32, #tpu.memory_space<any>>
    %c12_i32 = arith.constant 12 : i32
    %c0_i32_64 = arith.constant 0 : i32
    %102 = tpu.memref_slice %arg9[%c12_i32, %c0_i32_64] : memref<16x32xf32, #tpu.memory_space<vmem>> -> memref<1x32xf32, #tpu.memory_space<vmem>>
    %103 = tpu.memref_slice %arg10[%c1_i32_62] : memref<2x!tpu.dma_semaphore, #tpu.memory_space<semaphore_mem>> -> memref<1x!tpu.dma_semaphore, #tpu.memory_space<semaphore_mem>>
    %104 = tpu.memref_squeeze %103 : memref<1x!tpu.dma_semaphore, #tpu.memory_space<semaphore_mem>> -> memref<!tpu.dma_semaphore, #tpu.memory_space<semaphore_mem>>
    tpu.enqueue_dma source(%101 : memref<1x32xf32, #tpu.memory_space<any>>) target(%102 : memref<1x32xf32, #tpu.memory_space<vmem>>) target_semaphore(%104 : memref<!tpu.dma_semaphore, #tpu.memory_space<semaphore_mem>>)
    %c8_i32_65 = arith.constant 8 : i32
    %105 = arith.addi %0, %c8_i32_65 : i32
    %c5_i32_66 = arith.constant 5 : i32
    %106 = arith.addi %105, %c5_i32_66 : i32
    %107 = arith.index_cast %106 : i32 to index
    %108 = memref.load %arg1[%107] : memref<16xi32, #tpu.memory_space<smem>>
    %c1_i32_67 = arith.constant 1 : i32
    %c0_i32_68 = arith.constant 0 : i32
    %109 = tpu.memref_slice %arg3[%108, %c0_i32_68] : memref<128x32xf32, #tpu.memory_space<any>> -> memref<1x32xf32, #tpu.memory_space<any>>
    %c13_i32 = arith.constant 13 : i32
    %c0_i32_69 = arith.constant 0 : i32
    %110 = tpu.memref_slice %arg9[%c13_i32, %c0_i32_69] : memref<16x32xf32, #tpu.memory_space<vmem>> -> memref<1x32xf32, #tpu.memory_space<vmem>>
    %111 = tpu.memref_slice %arg10[%c1_i32_67] : memref<2x!tpu.dma_semaphore, #tpu.memory_space<semaphore_mem>> -> memref<1x!tpu.dma_semaphore, #tpu.memory_space<semaphore_mem>>
    %112 = tpu.memref_squeeze %111 : memref<1x!tpu.dma_semaphore, #tpu.memory_space<semaphore_mem>> -> memref<!tpu.dma_semaphore, #tpu.memory_space<semaphore_mem>>
    tpu.enqueue_dma source(%109 : memref<1x32xf32, #tpu.memory_space<any>>) target(%110 : memref<1x32xf32, #tpu.memory_space<vmem>>) target_semaphore(%112 : memref<!tpu.dma_semaphore, #tpu.memory_space<semaphore_mem>>)
    %c8_i32_70 = arith.constant 8 : i32
    %113 = arith.addi %0, %c8_i32_70 : i32
    %c6_i32_71 = arith.constant 6 : i32
    %114 = arith.addi %113, %c6_i32_71 : i32
    %115 = arith.index_cast %114 : i32 to index
    %116 = memref.load %arg1[%115] : memref<16xi32, #tpu.memory_space<smem>>
    %c1_i32_72 = arith.constant 1 : i32
    %c0_i32_73 = arith.constant 0 : i32
    %117 = tpu.memref_slice %arg3[%116, %c0_i32_73] : memref<128x32xf32, #tpu.memory_space<any>> -> memref<1x32xf32, #tpu.memory_space<any>>
    %c14_i32 = arith.constant 14 : i32
    %c0_i32_74 = arith.constant 0 : i32
    %118 = tpu.memref_slice %arg9[%c14_i32, %c0_i32_74] : memref<16x32xf32, #tpu.memory_space<vmem>> -> memref<1x32xf32, #tpu.memory_space<vmem>>
    %119 = tpu.memref_slice %arg10[%c1_i32_72] : memref<2x!tpu.dma_semaphore, #tpu.memory_space<semaphore_mem>> -> memref<1x!tpu.dma_semaphore, #tpu.memory_space<semaphore_mem>>
    %120 = tpu.memref_squeeze %119 : memref<1x!tpu.dma_semaphore, #tpu.memory_space<semaphore_mem>> -> memref<!tpu.dma_semaphore, #tpu.memory_space<semaphore_mem>>
    tpu.enqueue_dma source(%117 : memref<1x32xf32, #tpu.memory_space<any>>) target(%118 : memref<1x32xf32, #tpu.memory_space<vmem>>) target_semaphore(%120 : memref<!tpu.dma_semaphore, #tpu.memory_space<semaphore_mem>>)
    %c8_i32_75 = arith.constant 8 : i32
    %121 = arith.addi %0, %c8_i32_75 : i32
    %c7_i32_76 = arith.constant 7 : i32
    %122 = arith.addi %121, %c7_i32_76 : i32
    %123 = arith.index_cast %122 : i32 to index
    %124 = memref.load %arg1[%123] : memref<16xi32, #tpu.memory_space<smem>>
    %c1_i32_77 = arith.constant 1 : i32
    %c0_i32_78 = arith.constant 0 : i32
    %125 = tpu.memref_slice %arg3[%124, %c0_i32_78] : memref<128x32xf32, #tpu.memory_space<any>> -> memref<1x32xf32, #tpu.memory_space<any>>
    %c15_i32 = arith.constant 15 : i32
    %c0_i32_79 = arith.constant 0 : i32
    %126 = tpu.memref_slice %arg9[%c15_i32, %c0_i32_79] : memref<16x32xf32, #tpu.memory_space<vmem>> -> memref<1x32xf32, #tpu.memory_space<vmem>>
    %127 = tpu.memref_slice %arg10[%c1_i32_77] : memref<2x!tpu.dma_semaphore, #tpu.memory_space<semaphore_mem>> -> memref<1x!tpu.dma_semaphore, #tpu.memory_space<semaphore_mem>>
    %128 = tpu.memref_squeeze %127 : memref<1x!tpu.dma_semaphore, #tpu.memory_space<semaphore_mem>> -> memref<!tpu.dma_semaphore, #tpu.memory_space<semaphore_mem>>
    tpu.enqueue_dma source(%125 : memref<1x32xf32, #tpu.memory_space<any>>) target(%126 : memref<1x32xf32, #tpu.memory_space<vmem>>) target_semaphore(%128 : memref<!tpu.dma_semaphore, #tpu.memory_space<semaphore_mem>>)
    %c0 = arith.constant 0 : index
    %c0_80 = arith.constant 0 : index
    %129 = vector.load %arg6[%c0, %c0_80] : memref<1x32xf32, #tpu.memory_space<vmem>>, vector<1x32xf32>
    %c0_81 = arith.constant 0 : index
    %c0_82 = arith.constant 0 : index
    %130 = vector.load %arg7[%c0_81, %c0_82] : memref<1x32xf32, #tpu.memory_space<vmem>>, vector<1x32xf32>
    %c0_83 = arith.constant 0 : index
    %c0_84 = arith.constant 0 : index
    %131 = vector.load %arg5[%c0_83, %c0_84] : memref<2x32xf32, #tpu.memory_space<vmem>>, vector<2x32xf32>
    %c0_i32_85 = arith.constant 0 : i32
    %c0_i32_86 = arith.constant 0 : i32
    %c0_i32_87 = arith.constant 0 : i32
    %132 = tpu.memref_slice %arg9[%c0_i32_86, %c0_i32_87] : memref<16x32xf32, #tpu.memory_space<vmem>> -> memref<8x32xf32, #tpu.memory_space<vmem>>
    %c0_i32_88 = arith.constant 0 : i32
    %c0_i32_89 = arith.constant 0 : i32
    %133 = tpu.memref_slice %arg9[%c0_i32_88, %c0_i32_89] : memref<16x32xf32, #tpu.memory_space<vmem>> -> memref<8x32xf32, #tpu.memory_space<vmem>>
    %134 = tpu.memref_slice %arg10[%c0_i32_85] : memref<2x!tpu.dma_semaphore, #tpu.memory_space<semaphore_mem>> -> memref<1x!tpu.dma_semaphore, #tpu.memory_space<semaphore_mem>>
    %135 = tpu.memref_squeeze %134 : memref<1x!tpu.dma_semaphore, #tpu.memory_space<semaphore_mem>> -> memref<!tpu.dma_semaphore, #tpu.memory_space<semaphore_mem>>
    tpu.wait_dma2 semaphore(%135 : memref<!tpu.dma_semaphore, #tpu.memory_space<semaphore_mem>>) src(%132 : memref<8x32xf32, #tpu.memory_space<vmem>>) dst(%133 : memref<8x32xf32, #tpu.memory_space<vmem>>)
    %c0_90 = arith.constant 0 : index
    %c0_91 = arith.constant 0 : index
    %136 = vector.load %arg9[%c0_90, %c0_91] : memref<16x32xf32, #tpu.memory_space<vmem>>, vector<8x32xf32>
    %c0_92 = arith.constant 0 : index
    %c0_93 = arith.constant 0 : index
    %137 = vector.load %arg4[%c0_92, %c0_93] : memref<16x32xf32, #tpu.memory_space<vmem>>, vector<8x32xf32>
    %c0_94 = arith.constant 0 : index
    %c0_95 = arith.constant 0 : index
    %138 = vector.load %arg2[%c0_94, %c0_95] : memref<16x1xi32, #tpu.memory_space<vmem>>, vector<8x1xi32>
    %c0_i32_96 = arith.constant 0 : i32
    %139 = vector.broadcast %c0_i32_96 : i32 to vector<8x1xi32>
    %140 = arith.cmpi eq, %138, %139 : vector<8x1xi32>
    %141 = vector.extract_strided_slice %131 {offsets = [0, 0], sizes = [1, 32], strides = [1, 1]} : vector<2x32xf32> to vector<1x32xf32>
    %142 = vector.extract_strided_slice %131 {offsets = [1, 0], sizes = [1, 32], strides = [1, 1]} : vector<2x32xf32> to vector<1x32xf32>
    %143 = vector.shape_cast %140 : vector<8x1xi1> to vector<8x1xi1>
    %144 = vector.broadcast %143 : vector<8x1xi1> to vector<8x32xi1>
    %145 = vector.shape_cast %141 : vector<1x32xf32> to vector<1x32xf32>
    %146 = vector.broadcast %145 : vector<1x32xf32> to vector<8x32xf32>
    %147 = vector.shape_cast %142 : vector<1x32xf32> to vector<1x32xf32>
    %148 = vector.broadcast %147 : vector<1x32xf32> to vector<8x32xf32>
    %149 = arith.select %144, %146, %148 : vector<8x32xi1>, vector<8x32xf32>
    %150 = arith.addf %136, %137 : vector<8x32xf32>
    %151 = arith.addf %150, %149 : vector<8x32xf32>
    %cst = arith.constant dense<0.000000e+00> : vector<8xf32>
    %152 = vector.multi_reduction <add>, %151, %cst [1] : vector<8x32xf32> to vector<8xf32>
    %153 = vector.shape_cast %152 : vector<8xf32> to vector<8x1xf32>
    %cst_97 = arith.constant 3.200000e+01 : f32
    %154 = vector.broadcast %cst_97 : f32 to vector<8x1xf32>
    %155 = arith.divf %153, %154 : vector<8x1xf32>
    %156 = vector.broadcast %155 : vector<8x1xf32> to vector<8x32xf32>
    %157 = arith.subf %151, %156 : vector<8x32xf32>
    %158 = arith.mulf %157, %157 : vector<8x32xf32>
    %cst_98 = arith.constant dense<0.000000e+00> : vector<8xf32>
    %159 = vector.multi_reduction <add>, %158, %cst_98 [1] : vector<8x32xf32> to vector<8xf32>
    %160 = vector.shape_cast %159 : vector<8xf32> to vector<8x1xf32>
    %cst_99 = arith.constant 3.200000e+01 : f32
    %161 = vector.broadcast %cst_99 : f32 to vector<8x1xf32>
    %162 = arith.divf %160, %161 : vector<8x1xf32>
    %163 = vector.broadcast %155 : vector<8x1xf32> to vector<8x32xf32>
    %164 = arith.subf %151, %163 : vector<8x32xf32>
    %cst_100 = arith.constant 9.99999996E-13 : f32
    %165 = vector.broadcast %cst_100 : f32 to vector<8x1xf32>
    %166 = arith.addf %162, %165 : vector<8x1xf32>
    %167 = math.rsqrt %166 : vector<8x1xf32>
    %168 = vector.broadcast %167 : vector<8x1xf32> to vector<8x32xf32>
    %169 = arith.mulf %164, %168 : vector<8x32xf32>
    %170 = vector.broadcast %129 : vector<1x32xf32> to vector<8x32xf32>
    %171 = arith.mulf %169, %170 : vector<8x32xf32>
    %172 = vector.broadcast %130 : vector<1x32xf32> to vector<8x32xf32>
    %173 = arith.addf %171, %172 : vector<8x32xf32>
    %c0_101 = arith.constant 0 : index
    %c0_102 = arith.constant 0 : index
    %174 = vector.load %arg8[%c0_101, %c0_102] : memref<16x32xf32, #tpu.memory_space<vmem>>, vector<8x32xf32>
    tpu.vector_store %arg8[%c0_101, %c0_102], %173 {strides = array<i32>} : memref<16x32xf32, #tpu.memory_space<vmem>>, vector<8x32xf32>,
    %c1_i32_103 = arith.constant 1 : i32
    %c8_i32_104 = arith.constant 8 : i32
    %c0_i32_105 = arith.constant 0 : i32
    %175 = tpu.memref_slice %arg9[%c8_i32_104, %c0_i32_105] : memref<16x32xf32, #tpu.memory_space<vmem>> -> memref<8x32xf32, #tpu.memory_space<vmem>>
    %c8_i32_106 = arith.constant 8 : i32
    %c0_i32_107 = arith.constant 0 : i32
    %176 = tpu.memref_slice %arg9[%c8_i32_106, %c0_i32_107] : memref<16x32xf32, #tpu.memory_space<vmem>> -> memref<8x32xf32, #tpu.memory_space<vmem>>
    %177 = tpu.memref_slice %arg10[%c1_i32_103] : memref<2x!tpu.dma_semaphore, #tpu.memory_space<semaphore_mem>> -> memref<1x!tpu.dma_semaphore, #tpu.memory_space<semaphore_mem>>
    %178 = tpu.memref_squeeze %177 : memref<1x!tpu.dma_semaphore, #tpu.memory_space<semaphore_mem>> -> memref<!tpu.dma_semaphore, #tpu.memory_space<semaphore_mem>>
    tpu.wait_dma2 semaphore(%178 : memref<!tpu.dma_semaphore, #tpu.memory_space<semaphore_mem>>) src(%175 : memref<8x32xf32, #tpu.memory_space<vmem>>) dst(%176 : memref<8x32xf32, #tpu.memory_space<vmem>>)
    %c8 = arith.constant 8 : index
    %c0_108 = arith.constant 0 : index
    %179 = vector.load %arg9[%c8, %c0_108] : memref<16x32xf32, #tpu.memory_space<vmem>>, vector<8x32xf32>
    %c8_109 = arith.constant 8 : index
    %c0_110 = arith.constant 0 : index
    %180 = vector.load %arg4[%c8_109, %c0_110] : memref<16x32xf32, #tpu.memory_space<vmem>>, vector<8x32xf32>
    %c8_111 = arith.constant 8 : index
    %c0_112 = arith.constant 0 : index
    %181 = vector.load %arg2[%c8_111, %c0_112] : memref<16x1xi32, #tpu.memory_space<vmem>>, vector<8x1xi32>
    %c0_i32_113 = arith.constant 0 : i32
    %182 = vector.broadcast %c0_i32_113 : i32 to vector<8x1xi32>
    %183 = arith.cmpi eq, %181, %182 : vector<8x1xi32>
    %184 = vector.extract_strided_slice %131 {offsets = [0, 0], sizes = [1, 32], strides = [1, 1]} : vector<2x32xf32> to vector<1x32xf32>
    %185 = vector.extract_strided_slice %131 {offsets = [1, 0], sizes = [1, 32], strides = [1, 1]} : vector<2x32xf32> to vector<1x32xf32>
    %186 = vector.shape_cast %183 : vector<8x1xi1> to vector<8x1xi1>
    %187 = vector.broadcast %186 : vector<8x1xi1> to vector<8x32xi1>
    %188 = vector.shape_cast %184 : vector<1x32xf32> to vector<1x32xf32>
    %189 = vector.broadcast %188 : vector<1x32xf32> to vector<8x32xf32>
    %190 = vector.shape_cast %185 : vector<1x32xf32> to vector<1x32xf32>
    %191 = vector.broadcast %190 : vector<1x32xf32> to vector<8x32xf32>
    %192 = arith.select %187, %189, %191 : vector<8x32xi1>, vector<8x32xf32>
    %193 = arith.addf %179, %180 : vector<8x32xf32>
    %194 = arith.addf %193, %192 : vector<8x32xf32>
    %cst_114 = arith.constant dense<0.000000e+00> : vector<8xf32>
    %195 = vector.multi_reduction <add>, %194, %cst_114 [1] : vector<8x32xf32> to vector<8xf32>
    %196 = vector.shape_cast %195 : vector<8xf32> to vector<8x1xf32>
    %cst_115 = arith.constant 3.200000e+01 : f32
    %197 = vector.broadcast %cst_115 : f32 to vector<8x1xf32>
    %198 = arith.divf %196, %197 : vector<8x1xf32>
    %199 = vector.broadcast %198 : vector<8x1xf32> to vector<8x32xf32>
    %200 = arith.subf %194, %199 : vector<8x32xf32>
    %201 = arith.mulf %200, %200 : vector<8x32xf32>
    %cst_116 = arith.constant dense<0.000000e+00> : vector<8xf32>
    %202 = vector.multi_reduction <add>, %201, %cst_116 [1] : vector<8x32xf32> to vector<8xf32>
    %203 = vector.shape_cast %202 : vector<8xf32> to vector<8x1xf32>
    %cst_117 = arith.constant 3.200000e+01 : f32
    %204 = vector.broadcast %cst_117 : f32 to vector<8x1xf32>
    %205 = arith.divf %203, %204 : vector<8x1xf32>
    %206 = vector.broadcast %198 : vector<8x1xf32> to vector<8x32xf32>
    %207 = arith.subf %194, %206 : vector<8x32xf32>
    %cst_118 = arith.constant 9.99999996E-13 : f32
    %208 = vector.broadcast %cst_118 : f32 to vector<8x1xf32>
    %209 = arith.addf %205, %208 : vector<8x1xf32>
    %210 = math.rsqrt %209 : vector<8x1xf32>
    %211 = vector.broadcast %210 : vector<8x1xf32> to vector<8x32xf32>
    %212 = arith.mulf %207, %211 : vector<8x32xf32>
    %213 = vector.broadcast %129 : vector<1x32xf32> to vector<8x32xf32>
    %214 = arith.mulf %212, %213 : vector<8x32xf32>
    %215 = vector.broadcast %130 : vector<1x32xf32> to vector<8x32xf32>
    %216 = arith.addf %214, %215 : vector<8x32xf32>
    %c8_119 = arith.constant 8 : index
    %c0_120 = arith.constant 0 : index
    %217 = vector.load %arg8[%c8_119, %c0_120] : memref<16x32xf32, #tpu.memory_space<vmem>>, vector<8x32xf32>
    tpu.vector_store %arg8[%c8_119, %c0_120], %216 {strides = array<i32>} : memref<16x32xf32, #tpu.memory_space<vmem>>, vector<8x32xf32>,
    return
  }
  func.func @transform_0(%arg0: i32, %arg1: memref<16xi32, #tpu.memory_space<smem>>) -> (i32, i32) {
    %c0_i32 = arith.constant 0 : i32
    %c0_i32_0 = arith.constant 0 : i32
    return %arg0, %c0_i32 : i32, i32
  }
  func.func @transform_2(%arg0: i32, %arg1: memref<16xi32, #tpu.memory_space<smem>>) -> (i32, i32) {
    %c0_i32 = arith.constant 0 : i32
    %c0_i32_0 = arith.constant 0 : i32
    %c0_i32_1 = arith.constant 0 : i32
    return %c0_i32, %c0_i32_0 : i32, i32
  }
  func.func @transform_3(%arg0: i32, %arg1: memref<16xi32, #tpu.memory_space<smem>>) -> (i32, i32) {
    %c0_i32 = arith.constant 0 : i32
    %c0_i32_0 = arith.constant 0 : i32
    %c0_i32_1 = arith.constant 0 : i32
    return %c0_i32, %c0_i32_0 : i32, i32
  }
  func.func @transform_4(%arg0: i32, %arg1: memref<16xi32, #tpu.memory_space<smem>>) -> (i32, i32) {
    %c0_i32 = arith.constant 0 : i32
    %c0_i32_0 = arith.constant 0 : i32
    %c0_i32_1 = arith.constant 0 : i32
    return %c0_i32, %c0_i32_0 : i32, i32
  }
  func.func @transform_5(%arg0: i32, %arg1: memref<16xi32, #tpu.memory_space<smem>>) -> (i32, i32) {
    %c0_i32 = arith.constant 0 : i32
    %c0_i32_0 = arith.constant 0 : i32
    %c0_i32_1 = arith.constant 0 : i32
    return %c0_i32, %c0_i32_0 : i32, i32
  }
  func.func @transform_6(%arg0: i32, %arg1: memref<16xi32, #tpu.memory_space<smem>>) -> (i32, i32) {
    %c0_i32 = arith.constant 0 : i32
    %c0_i32_0 = arith.constant 0 : i32
    return %arg0, %c0_i32 : i32, i32
  }
}

</mosaic_0001>

<llo_original>
// kernel: tpu_custom_call.1
$region0: #{tpu_custom_call.1}
  #allocation0 [shape = 'u32[]', space=smem, size = 0x4, offset = 0x4, fixed_abs, tag = 'smem constant byte address 0x4 - core index']
  #allocation1 [shape = 'u32[72,128]{1,0:T(1,128)}', space=vmem, size = 0x9000, scoped, tag = 'internal scratch']
  #allocation2 [shape = 'f32[16,32]{1,0:T(8,128)}', space=vmem, size = 0x2000, scoped, tag = 'scratch operand']
  #allocation3 [shape = 's32[2]{0}', space=sflag, size = 0x8, scoped, tag = 'scratch operand']
  #allocation4 [shape = 's32[1]{0}', space=sflag, size = 0x4, scoped, tag = 'scoped memory for tpu_custom_call.1']
  #allocation5 [shape = 'u8[512]{0}', space=smem, size = 0x200, scoped, tag = 'prefetched SMEM operand 0']
  #allocation8 [shape = 's32[]', space=sflag, size = 0x4, offset = 0, fixed_abs, tag = 'sflag constant byte address 0x0 - dummy sync flag']
  #allocation9 [shape = 's32[]', space=sflag, size = 0x4, offset = 0, fixed_abs, tag = 'sflag constant byte address 0x0 - dummy sync flag']
  #allocation10 [shape = 's32[]', space=sflag, size = 0x4, offset = 0, fixed_abs, tag = 'sflag constant byte address 0x0 - dummy sync flag']
  #allocation11 [shape = 's32[]', space=sflag, size = 0x4, offset = 0, fixed_abs, tag = 'sflag constant byte address 0x0 - dummy sync flag']
  #allocation12 [shape = 's32[]', space=sflag, size = 0x4, offset = 0, fixed_abs, tag = 'sflag constant byte address 0x0 - dummy sync flag']
  #allocation13 [shape = 's32[]', space=sflag, size = 0x4, offset = 0, fixed_abs, tag = 'sflag constant byte address 0x0 - dummy sync flag']
  #allocation14 [shape = 's32[]', space=sflag, size = 0x4, offset = 0, fixed_abs, tag = 'sflag constant byte address 0x0 - dummy sync flag']
  #allocation15 [shape = 's32[]', space=sflag, size = 0x4, offset = 0, fixed_abs, tag = 'sflag constant byte address 0x0 - dummy sync flag']
  #allocation16 [shape = 's32[]', space=sflag, size = 0x4, offset = 0, fixed_abs, tag = 'sflag constant byte address 0x0 - dummy sync flag']
  #allocation17 [shape = 's32[]', space=sflag, size = 0x4, offset = 0, fixed_abs, tag = 'sflag constant byte address 0x0 - dummy sync flag']
  #allocation18 [shape = 's32[]', space=sflag, size = 0x4, offset = 0, fixed_abs, tag = 'sflag constant byte address 0x0 - dummy sync flag']
  #allocation19 [shape = 's32[]', space=sflag, size = 0x4, offset = 0, fixed_abs, tag = 'sflag constant byte address 0x0 - dummy sync flag']
  #allocation20 [shape = 's32[]', space=sflag, size = 0x4, offset = 0, fixed_abs, tag = 'sflag constant byte address 0x0 - dummy sync flag']
  #allocation21 [shape = 's32[]', space=sflag, size = 0x4, offset = 0, fixed_abs, tag = 'sflag constant byte address 0x0 - dummy sync flag']
  #allocation22 [shape = 's32[]', space=sflag, size = 0x4, offset = 0, fixed_abs, tag = 'sflag constant byte address 0x0 - dummy sync flag']
  #allocation23 [shape = 's32[]', space=sflag, size = 0x4, offset = 0, fixed_abs, tag = 'sflag constant byte address 0x0 - dummy sync flag']
  %s0 = inlined_call_operand.vmem [shape: s32[16], index: 0, kind: input, shape index: {}]
  %s1 = inlined_call_operand.vmem [shape: s32[16,1], index: 1, kind: input, shape index: {}]
  %s2 = inlined_call_operand.vmem [shape: f32[128,32], index: 2, kind: input, shape index: {}]
  %s3 = inlined_call_operand.vmem [shape: f32[16,32], index: 3, kind: input, shape index: {}]
  %s4 = inlined_call_operand.vmem [shape: f32[2,32], index: 4, kind: input, shape index: {}]
  %s5 = inlined_call_operand.vmem [shape: f32[1,32], index: 5, kind: input, shape index: {}]
  %s6 = inlined_call_operand.vmem [shape: f32[1,32], index: 6, kind: input, shape index: {}]
  %s7 = inlined_call_operand.hbm [shape: f32[16,32], index: 7, kind: output, shape index: {}]
  %s8 = sld [smem:[#allocation0]]
  $region510: #{tpu_custom_call.1} parent=0
    _
  %s10 = ssub.s32 1, %s8
  %s11 = scalar_select 0, %s10, %s8
  %s13 = sshll.u32 %s0, 4
  %s14 = int_to_ptr.vmem [resolvable:$true] %s13
  %16 = dma.vmem_to_smem %s14, 16, [#allocation5], [#allocation4]
  %18 = dma.done [#allocation4], 16
  %19 = sfence
  $region1: #{tpu_custom_call.1} parent=0
    #allocation6 [shape = 'u8[8192]{0}', space=vmem, size = 0x2000, scoped, tag = 'output window, operand 0, single buffered']
    #allocation7 [shape = 's32[1]{0}', space=sflag, size = 0x4, scoped, tag = 'scoped memory for tpu_custom_call.1']
    %20 = vsyncpa [#allocation7], 0
    // Predicated region
    $region2: #{tpu_custom_call.1} parent=1 // pred_check
      _
    $region3: #{tpu_custom_call.1} parent=1 // pred_check_branch
      %22 = sbr.rel (0) target = $region5
    $region4: #{tpu_custom_call.1} parent=1 // pred_region
      _
    $region5: #{tpu_custom_call.1} parent=1 // pred_fallthru
      _
    // Predicated region
    $region6: #{tpu_custom_call.1} parent=1 // pred_check
      _
    $region7: #{tpu_custom_call.1} parent=1 // pred_check_branch
      %24 = sbr.rel (0) target = $region9
    $region8: #{tpu_custom_call.1} parent=1 // pred_region
      _
    $region9: #{tpu_custom_call.1} parent=1 // pred_fallthru
      _
    // Predicated region
    $region10: #{tpu_custom_call.1} parent=1 // pred_check
      _
    $region11: #{tpu_custom_call.1} parent=1 // pred_check_branch
      %26 = sbr.rel (0) target = $region13
    $region12: #{tpu_custom_call.1} parent=1 // pred_region
      _
    $region13: #{tpu_custom_call.1} parent=1 // pred_fallthru
      _
    // Predicated region
    $region14: #{tpu_custom_call.1} parent=1 // pred_check
      _
    $region15: #{tpu_custom_call.1} parent=1 // pred_check_branch
      %28 = sbr.rel (0) target = $region17
    $region16: #{tpu_custom_call.1} parent=1 // pred_region
      _
    $region17: #{tpu_custom_call.1} parent=1 // pred_fallthru
      _
    // Predicated region
    $region18: #{tpu_custom_call.1} parent=1 // pred_check
      _
    $region19: #{tpu_custom_call.1} parent=1 // pred_check_branch
      %30 = sbr.rel (0) target = $region21
    $region20: #{tpu_custom_call.1} parent=1 // pred_region
      _
    $region21: #{tpu_custom_call.1} parent=1 // pred_fallthru
      _
    %s31 = smul.u32 0, 16
    %s32 = sld [smem:[#allocation5 + %s31]]
    %s33 = scalar_lea.vmem %s2, %s32
    // Predicated region
    $region22: #{tpu_custom_call.1} parent=1 // pred_check
      _
    $region23: #{tpu_custom_call.1} parent=1 // pred_check_branch
      %35 = sbr.rel target = $region25
    $region24: #{tpu_custom_call.1} parent=1 // pred_region
      // Predicated region
      $region37: #{tpu_custom_call.1} parent=24 // pred_check
        _
      $region38: #{tpu_custom_call.1} parent=24 // pred_check_branch
        %51 = sbr.rel (0) target = $region40
      $region39: #{tpu_custom_call.1} parent=24 // pred_region
        %s53 = ssub.s32 2, 1
        loop: start=0, step=1, limit=1
        $region41: #{tpu_custom_call.1} parent=39 // loop_pre_header
          _
        $region42: #{tpu_custom_call.1} parent=39 // loop_header
          %s55 = sphi 0, %s59
          %p56 = scmp.ge.s32.totalorder %s55, 1
          %s60 = sphi %s33, %s33
          %s61 = sphi [#allocation2], [#allocation2]
        $region43: #{tpu_custom_call.1} parent=39 // loop_header_branch
          %58 = sbr.rel (%p56) target = $region47
        $region44: #{tpu_custom_call.1} parent=39 // loop_body
          %v62 = vld [vmem:[%s60] sm:%s53]
          %63 = vst [vmem:[%s61] sm:%s53] %v62
        $region45: #{tpu_custom_call.1} parent=39 // loop_footer
          %s59 = sadd.s32 1, %s55
        $region46: #{tpu_custom_call.1} parent=39 // loop_footer_branch
          %54 = sbr.rel target = $region42
        $region47: #{tpu_custom_call.1} parent=39 // loop_exit
          _
      $region40: #{tpu_custom_call.1} parent=24 // pred_fallthru
        _
    $region25: #{tpu_custom_call.1} parent=1 // pred_fallthru
      _
    // Predicated region
    $region26: #{tpu_custom_call.1} parent=1 // pred_check
      _
    $region27: #{tpu_custom_call.1} parent=1 // pred_check_branch
      %37 = sbr.rel (0) target = $region29
    $region28: #{tpu_custom_call.1} parent=1 // pred_region
      %s39 = ssub.s32 2, 1
      loop: start=0, step=1, limit=1
      $region30: #{tpu_custom_call.1} parent=28 // loop_pre_header
        _
      $region31: #{tpu_custom_call.1} parent=28 // loop_header
        %s41 = sphi 0, %s45
        %p42 = scmp.ge.s32.totalorder %s41, 1
        %s46 = sphi %s33, %s33
        %s47 = sphi [#allocation2], [#allocation2]
      $region32: #{tpu_custom_call.1} parent=28 // loop_header_branch
        %44 = sbr.rel (%p42) target = $region36
      $region33: #{tpu_custom_call.1} parent=28 // loop_body
        %v48 = vld [vmem:[%s46] sm:%s39]
        %49 = vst [vmem:[%s47] sm:%s39] %v48
      $region34: #{tpu_custom_call.1} parent=28 // loop_footer
        %s45 = sadd.s32 1, %s41
      $region35: #{tpu_custom_call.1} parent=28 // loop_footer_branch
        %40 = sbr.rel target = $region31
      $region36: #{tpu_custom_call.1} parent=28 // loop_exit
        _
    $region29: #{tpu_custom_call.1} parent=1 // pred_fallthru
      _
    // Predicated region
    $region48: #{tpu_custom_call.1} parent=1 // pred_check
      _
    $region49: #{tpu_custom_call.1} parent=1 // pred_check_branch
      %66 = sbr.rel (0) target = $region51
    $region50: #{tpu_custom_call.1} parent=1 // pred_region
      %67 = vsyncadd [#allocation3], 16
    $region51: #{tpu_custom_call.1} parent=1 // pred_fallthru
      _
    %s68 = sadd.s32 %s31, 1
    %s69 = sld [smem:[#allocation5 + %s68]]
    %s70 = scalar_lea.vmem %s2, %s69
    %s71 = scalar_lea.vmem [#allocation2], 1
    // Predicated region
    $region52: #{tpu_custom_call.1} parent=1 // pred_check
      _
    $region53: #{tpu_custom_call.1} parent=1 // pred_check_branch
      %73 = sbr.rel target = $region55
    $region54: #{tpu_custom_call.1} parent=1 // pred_region
      // Predicated region
      $region67: #{tpu_custom_call.1} parent=54 // pred_check
        _
      $region68: #{tpu_custom_call.1} parent=54 // pred_check_branch
        %89 = sbr.rel (0) target = $region70
      $region69: #{tpu_custom_call.1} parent=54 // pred_region
        %s91 = ssub.s32 2, 1
        loop: start=0, step=1, limit=1
        $region71: #{tpu_custom_call.1} parent=69 // loop_pre_header
          _
        $region72: #{tpu_custom_call.1} parent=69 // loop_header
          %s93 = sphi 0, %s97
          %p94 = scmp.ge.s32.totalorder %s93, 1
          %s98 = sphi %s70, %s70
          %s99 = sphi %s71, %s71
        $region73: #{tpu_custom_call.1} parent=69 // loop_header_branch
          %96 = sbr.rel (%p94) target = $region77
        $region74: #{tpu_custom_call.1} parent=69 // loop_body
          %v100 = vld [vmem:[%s98] sm:%s91]
          %101 = vst [vmem:[%s99] sm:%s91] %v100
        $region75: #{tpu_custom_call.1} parent=69 // loop_footer
          %s97 = sadd.s32 1, %s93
        $region76: #{tpu_custom_call.1} parent=69 // loop_footer_branch
          %92 = sbr.rel target = $region72
        $region77: #{tpu_custom_call.1} parent=69 // loop_exit
          _
      $region70: #{tpu_custom_call.1} parent=54 // pred_fallthru
        _
    $region55: #{tpu_custom_call.1} parent=1 // pred_fallthru
      _
    // Predicated region
    $region56: #{tpu_custom_call.1} parent=1 // pred_check
      _
    $region57: #{tpu_custom_call.1} parent=1 // pred_check_branch
      %75 = sbr.rel (0) target = $region59
    $region58: #{tpu_custom_call.1} parent=1 // pred_region
      %s77 = ssub.s32 2, 1
      loop: start=0, step=1, limit=1
      $region60: #{tpu_custom_call.1} parent=58 // loop_pre_header
        _
      $region61: #{tpu_custom_call.1} parent=58 // loop_header
        %s79 = sphi 0, %s83
        %p80 = scmp.ge.s32.totalorder %s79, 1
        %s84 = sphi %s70, %s70
        %s85 = sphi %s71, %s71
      $region62: #{tpu_custom_call.1} parent=58 // loop_header_branch
        %82 = sbr.rel (%p80) target = $region66
      $region63: #{tpu_custom_call.1} parent=58 // loop_body
        %v86 = vld [vmem:[%s84] sm:%s77]
        %87 = vst [vmem:[%s85] sm:%s77] %v86
      $region64: #{tpu_custom_call.1} parent=58 // loop_footer
        %s83 = sadd.s32 1, %s79
      $region65: #{tpu_custom_call.1} parent=58 // loop_footer_branch
        %78 = sbr.rel target = $region61
      $region66: #{tpu_custom_call.1} parent=58 // loop_exit
        _
    $region59: #{tpu_custom_call.1} parent=1 // pred_fallthru
      _
    // Predicated region
    $region78: #{tpu_custom_call.1} parent=1 // pred_check
      _
    $region79: #{tpu_custom_call.1} parent=1 // pred_check_branch
      %104 = sbr.rel (0) target = $region81
    $region80: #{tpu_custom_call.1} parent=1 // pred_region
      %105 = vsyncadd [#allocation3], 16
    $region81: #{tpu_custom_call.1} parent=1 // pred_fallthru
      _
    %s106 = sadd.s32 %s31, 2
    %s107 = sld [smem:[#allocation5 + %s106]]
    %s108 = scalar_lea.vmem %s2, %s107
    %s109 = scalar_lea.vmem [#allocation2], 2
    // Predicated region
    $region82: #{tpu_custom_call.1} parent=1 // pred_check
      _
    $region83: #{tpu_custom_call.1} parent=1 // pred_check_branch
      %111 = sbr.rel target = $region85
    $region84: #{tpu_custom_call.1} parent=1 // pred_region
      // Predicated region
      $region97: #{tpu_custom_call.1} parent=84 // pred_check
        _
      $region98: #{tpu_custom_call.1} parent=84 // pred_check_branch
        %127 = sbr.rel (0) target = $region100
      $region99: #{tpu_custom_call.1} parent=84 // pred_region
        %s129 = ssub.s32 2, 1
        loop: start=0, step=1, limit=1
        $region101: #{tpu_custom_call.1} parent=99 // loop_pre_header
          _
        $region102: #{tpu_custom_call.1} parent=99 // loop_header
          %s131 = sphi 0, %s135
          %p132 = scmp.ge.s32.totalorder %s131, 1
          %s136 = sphi %s108, %s108
          %s137 = sphi %s109, %s109
        $region103: #{tpu_custom_call.1} parent=99 // loop_header_branch
          %134 = sbr.rel (%p132) target = $region107
        $region104: #{tpu_custom_call.1} parent=99 // loop_body
          %v138 = vld [vmem:[%s136] sm:%s129]
          %139 = vst [vmem:[%s137] sm:%s129] %v138
        $region105: #{tpu_custom_call.1} parent=99 // loop_footer
          %s135 = sadd.s32 1, %s131
        $region106: #{tpu_custom_call.1} parent=99 // loop_footer_branch
          %130 = sbr.rel target = $region102
        $region107: #{tpu_custom_call.1} parent=99 // loop_exit
          _
      $region100: #{tpu_custom_call.1} parent=84 // pred_fallthru
        _
    $region85: #{tpu_custom_call.1} parent=1 // pred_fallthru
      _
    // Predicated region
    $region86: #{tpu_custom_call.1} parent=1 // pred_check
      _
    $region87: #{tpu_custom_call.1} parent=1 // pred_check_branch
      %113 = sbr.rel (0) target = $region89
    $region88: #{tpu_custom_call.1} parent=1 // pred_region
      %s115 = ssub.s32 2, 1
      loop: start=0, step=1, limit=1
      $region90: #{tpu_custom_call.1} parent=88 // loop_pre_header
        _
      $region91: #{tpu_custom_call.1} parent=88 // loop_header
        %s117 = sphi 0, %s121
        %p118 = scmp.ge.s32.totalorder %s117, 1
        %s122 = sphi %s108, %s108
        %s123 = sphi %s109, %s109
      $region92: #{tpu_custom_call.1} parent=88 // loop_header_branch
        %120 = sbr.rel (%p118) target = $region96
      $region93: #{tpu_custom_call.1} parent=88 // loop_body
        %v124 = vld [vmem:[%s122] sm:%s115]
        %125 = vst [vmem:[%s123] sm:%s115] %v124
      $region94: #{tpu_custom_call.1} parent=88 // loop_footer
        %s121 = sadd.s32 1, %s117
      $region95: #{tpu_custom_call.1} parent=88 // loop_footer_branch
        %116 = sbr.rel target = $region91
      $region96: #{tpu_custom_call.1} parent=88 // loop_exit
        _
    $region89: #{tpu_custom_call.1} parent=1 // pred_fallthru
      _
    // Predicated region
    $region108: #{tpu_custom_call.1} parent=1 // pred_check
      _
    $region109: #{tpu_custom_call.1} parent=1 // pred_check_branch
      %142 = sbr.rel (0) target = $region111
    $region110: #{tpu_custom_call.1} parent=1 // pred_region
      %143 = vsyncadd [#allocation3], 16
    $region111: #{tpu_custom_call.1} parent=1 // pred_fallthru
      _
    %s144 = sadd.s32 %s31, 3
    %s145 = sld [smem:[#allocation5 + %s144]]
    %s146 = scalar_lea.vmem %s2, %s145
    %s147 = scalar_lea.vmem [#allocation2], 3
    // Predicated region
    $region112: #{tpu_custom_call.1} parent=1 // pred_check
      _
    $region113: #{tpu_custom_call.1} parent=1 // pred_check_branch
      %149 = sbr.rel target = $region115
    $region114: #{tpu_custom_call.1} parent=1 // pred_region
      // Predicated region
      $region127: #{tpu_custom_call.1} parent=114 // pred_check
        _
      $region128: #{tpu_custom_call.1} parent=114 // pred_check_branch
        %165 = sbr.rel (0) target = $region130
      $region129: #{tpu_custom_call.1} parent=114 // pred_region
        %s167 = ssub.s32 2, 1
        loop: start=0, step=1, limit=1
        $region131: #{tpu_custom_call.1} parent=129 // loop_pre_header
          _
        $region132: #{tpu_custom_call.1} parent=129 // loop_header
          %s169 = sphi 0, %s173
          %p170 = scmp.ge.s32.totalorder %s169, 1
          %s174 = sphi %s146, %s146
          %s175 = sphi %s147, %s147
        $region133: #{tpu_custom_call.1} parent=129 // loop_header_branch
          %172 = sbr.rel (%p170) target = $region137
        $region134: #{tpu_custom_call.1} parent=129 // loop_body
          %v176 = vld [vmem:[%s174] sm:%s167]
          %177 = vst [vmem:[%s175] sm:%s167] %v176
        $region135: #{tpu_custom_call.1} parent=129 // loop_footer
          %s173 = sadd.s32 1, %s169
        $region136: #{tpu_custom_call.1} parent=129 // loop_footer_branch
          %168 = sbr.rel target = $region132
        $region137: #{tpu_custom_call.1} parent=129 // loop_exit
          _
      $region130: #{tpu_custom_call.1} parent=114 // pred_fallthru
        _
    $region115: #{tpu_custom_call.1} parent=1 // pred_fallthru
      _
    // Predicated region
    $region116: #{tpu_custom_call.1} parent=1 // pred_check
      _
    $region117: #{tpu_custom_call.1} parent=1 // pred_check_branch
      %151 = sbr.rel (0) target = $region119
    $region118: #{tpu_custom_call.1} parent=1 // pred_region
      %s153 = ssub.s32 2, 1
      loop: start=0, step=1, limit=1
      $region120: #{tpu_custom_call.1} parent=118 // loop_pre_header
        _
      $region121: #{tpu_custom_call.1} parent=118 // loop_header
        %s155 = sphi 0, %s159
        %p156 = scmp.ge.s32.totalorder %s155, 1
        %s160 = sphi %s146, %s146
        %s161 = sphi %s147, %s147
      $region122: #{tpu_custom_call.1} parent=118 // loop_header_branch
        %158 = sbr.rel (%p156) target = $region126
      $region123: #{tpu_custom_call.1} parent=118 // loop_body
        %v162 = vld [vmem:[%s160] sm:%s153]
        %163 = vst [vmem:[%s161] sm:%s153] %v162
      $region124: #{tpu_custom_call.1} parent=118 // loop_footer
        %s159 = sadd.s32 1, %s155
      $region125: #{tpu_custom_call.1} parent=118 // loop_footer_branch
        %154 = sbr.rel target = $region121
      $region126: #{tpu_custom_call.1} parent=118 // loop_exit
        _
    $region119: #{tpu_custom_call.1} parent=1 // pred_fallthru
      _
    // Predicated region
    $region138: #{tpu_custom_call.1} parent=1 // pred_check
      _
    $region139: #{tpu_custom_call.1} parent=1 // pred_check_branch
      %180 = sbr.rel (0) target = $region141
    $region140: #{tpu_custom_call.1} parent=1 // pred_region
      %181 = vsyncadd [#allocation3], 16
    $region141: #{tpu_custom_call.1} parent=1 // pred_fallthru
      _
    %s182 = sadd.s32 %s31, 4
    %s183 = sld [smem:[#allocation5 + %s182]]
    %s184 = scalar_lea.vmem %s2, %s183
    %s185 = scalar_lea.vmem [#allocation2], 4
    // Predicated region
    $region142: #{tpu_custom_call.1} parent=1 // pred_check
      _
    $region143: #{tpu_custom_call.1} parent=1 // pred_check_branch
      %187 = sbr.rel target = $region145
    $region144: #{tpu_custom_call.1} parent=1 // pred_region
      // Predicated region
      $region157: #{tpu_custom_call.1} parent=144 // pred_check
        _
      $region158: #{tpu_custom_call.1} parent=144 // pred_check_branch
        %203 = sbr.rel (0) target = $region160
      $region159: #{tpu_custom_call.1} parent=144 // pred_region
        %s205 = ssub.s32 2, 1
        loop: start=0, step=1, limit=1
        $region161: #{tpu_custom_call.1} parent=159 // loop_pre_header
          _
        $region162: #{tpu_custom_call.1} parent=159 // loop_header
          %s207 = sphi 0, %s211
          %p208 = scmp.ge.s32.totalorder %s207, 1
          %s212 = sphi %s184, %s184
          %s213 = sphi %s185, %s185
        $region163: #{tpu_custom_call.1} parent=159 // loop_header_branch
          %210 = sbr.rel (%p208) target = $region167
        $region164: #{tpu_custom_call.1} parent=159 // loop_body
          %v214 = vld [vmem:[%s212] sm:%s205]
          %215 = vst [vmem:[%s213] sm:%s205] %v214
        $region165: #{tpu_custom_call.1} parent=159 // loop_footer
          %s211 = sadd.s32 1, %s207
        $region166: #{tpu_custom_call.1} parent=159 // loop_footer_branch
          %206 = sbr.rel target = $region162
        $region167: #{tpu_custom_call.1} parent=159 // loop_exit
          _
      $region160: #{tpu_custom_call.1} parent=144 // pred_fallthru
        _
    $region145: #{tpu_custom_call.1} parent=1 // pred_fallthru
      _
    // Predicated region
    $region146: #{tpu_custom_call.1} parent=1 // pred_check
      _
    $region147: #{tpu_custom_call.1} parent=1 // pred_check_branch
      %189 = sbr.rel (0) target = $region149
    $region148: #{tpu_custom_call.1} parent=1 // pred_region
      %s191 = ssub.s32 2, 1
      loop: start=0, step=1, limit=1
      $region150: #{tpu_custom_call.1} parent=148 // loop_pre_header
        _
      $region151: #{tpu_custom_call.1} parent=148 // loop_header
        %s193 = sphi 0, %s197
        %p194 = scmp.ge.s32.totalorder %s193, 1
        %s198 = sphi %s184, %s184
        %s199 = sphi %s185, %s185
      $region152: #{tpu_custom_call.1} parent=148 // loop_header_branch
        %196 = sbr.rel (%p194) target = $region156
      $region153: #{tpu_custom_call.1} parent=148 // loop_body
        %v200 = vld [vmem:[%s198] sm:%s191]
        %201 = vst [vmem:[%s199] sm:%s191] %v200
      $region154: #{tpu_custom_call.1} parent=148 // loop_footer
        %s197 = sadd.s32 1, %s193
      $region155: #{tpu_custom_call.1} parent=148 // loop_footer_branch
        %192 = sbr.rel target = $region151
      $region156: #{tpu_custom_call.1} parent=148 // loop_exit
        _
    $region149: #{tpu_custom_call.1} parent=1 // pred_fallthru
      _
    // Predicated region
    $region168: #{tpu_custom_call.1} parent=1 // pred_check
      _
    $region169: #{tpu_custom_call.1} parent=1 // pred_check_branch
      %218 = sbr.rel (0) target = $region171
    $region170: #{tpu_custom_call.1} parent=1 // pred_region
      %219 = vsyncadd [#allocation3], 16
    $region171: #{tpu_custom_call.1} parent=1 // pred_fallthru
      _
    %s220 = sadd.s32 %s31, 5
    %s221 = sld [smem:[#allocation5 + %s220]]
    %s222 = scalar_lea.vmem %s2, %s221
    %s223 = scalar_lea.vmem [#allocation2], 5
    // Predicated region
    $region172: #{tpu_custom_call.1} parent=1 // pred_check
      _
    $region173: #{tpu_custom_call.1} parent=1 // pred_check_branch
      %225 = sbr.rel target = $region175
    $region174: #{tpu_custom_call.1} parent=1 // pred_region
      // Predicated region
      $region187: #{tpu_custom_call.1} parent=174 // pred_check
        _
      $region188: #{tpu_custom_call.1} parent=174 // pred_check_branch
        %241 = sbr.rel (0) target = $region190
      $region189: #{tpu_custom_call.1} parent=174 // pred_region
        %s243 = ssub.s32 2, 1
        loop: start=0, step=1, limit=1
        $region191: #{tpu_custom_call.1} parent=189 // loop_pre_header
          _
        $region192: #{tpu_custom_call.1} parent=189 // loop_header
          %s245 = sphi 0, %s249
          %p246 = scmp.ge.s32.totalorder %s245, 1
          %s250 = sphi %s222, %s222
          %s251 = sphi %s223, %s223
        $region193: #{tpu_custom_call.1} parent=189 // loop_header_branch
          %248 = sbr.rel (%p246) target = $region197
        $region194: #{tpu_custom_call.1} parent=189 // loop_body
          %v252 = vld [vmem:[%s250] sm:%s243]
          %253 = vst [vmem:[%s251] sm:%s243] %v252
        $region195: #{tpu_custom_call.1} parent=189 // loop_footer
          %s249 = sadd.s32 1, %s245
        $region196: #{tpu_custom_call.1} parent=189 // loop_footer_branch
          %244 = sbr.rel target = $region192
        $region197: #{tpu_custom_call.1} parent=189 // loop_exit
          _
      $region190: #{tpu_custom_call.1} parent=174 // pred_fallthru
        _
    $region175: #{tpu_custom_call.1} parent=1 // pred_fallthru
      _
    // Predicated region
    $region176: #{tpu_custom_call.1} parent=1 // pred_check
      _
    $region177: #{tpu_custom_call.1} parent=1 // pred_check_branch
      %227 = sbr.rel (0) target = $region179
    $region178: #{tpu_custom_call.1} parent=1 // pred_region
      %s229 = ssub.s32 2, 1
      loop: start=0, step=1, limit=1
      $region180: #{tpu_custom_call.1} parent=178 // loop_pre_header
        _
      $region181: #{tpu_custom_call.1} parent=178 // loop_header
        %s231 = sphi 0, %s235
        %p232 = scmp.ge.s32.totalorder %s231, 1
        %s236 = sphi %s222, %s222
        %s237 = sphi %s223, %s223
      $region182: #{tpu_custom_call.1} parent=178 // loop_header_branch
        %234 = sbr.rel (%p232) target = $region186
      $region183: #{tpu_custom_call.1} parent=178 // loop_body
        %v238 = vld [vmem:[%s236] sm:%s229]
        %239 = vst [vmem:[%s237] sm:%s229] %v238
      $region184: #{tpu_custom_call.1} parent=178 // loop_footer
        %s235 = sadd.s32 1, %s231
      $region185: #{tpu_custom_call.1} parent=178 // loop_footer_branch
        %230 = sbr.rel target = $region181
      $region186: #{tpu_custom_call.1} parent=178 // loop_exit
        _
    $region179: #{tpu_custom_call.1} parent=1 // pred_fallthru
      _
    // Predicated region
    $region198: #{tpu_custom_call.1} parent=1 // pred_check
      _
    $region199: #{tpu_custom_call.1} parent=1 // pred_check_branch
      %256 = sbr.rel (0) target = $region201
    $region200: #{tpu_custom_call.1} parent=1 // pred_region
      %257 = vsyncadd [#allocation3], 16
    $region201: #{tpu_custom_call.1} parent=1 // pred_fallthru
      _
    %s258 = sadd.s32 %s31, 6
    %s259 = sld [smem:[#allocation5 + %s258]]
    %s260 = scalar_lea.vmem %s2, %s259
    %s261 = scalar_lea.vmem [#allocation2], 6
    // Predicated region
    $region202: #{tpu_custom_call.1} parent=1 // pred_check
      _
    $region203: #{tpu_custom_call.1} parent=1 // pred_check_branch
      %263 = sbr.rel target = $region205
    $region204: #{tpu_custom_call.1} parent=1 // pred_region
      // Predicated region
      $region217: #{tpu_custom_call.1} parent=204 // pred_check
        _
      $region218: #{tpu_custom_call.1} parent=204 // pred_check_branch
        %279 = sbr.rel (0) target = $region220
      $region219: #{tpu_custom_call.1} parent=204 // pred_region
        %s281 = ssub.s32 2, 1
        loop: start=0, step=1, limit=1
        $region221: #{tpu_custom_call.1} parent=219 // loop_pre_header
          _
        $region222: #{tpu_custom_call.1} parent=219 // loop_header
          %s283 = sphi 0, %s287
          %p284 = scmp.ge.s32.totalorder %s283, 1
          %s288 = sphi %s260, %s260
          %s289 = sphi %s261, %s261
        $region223: #{tpu_custom_call.1} parent=219 // loop_header_branch
          %286 = sbr.rel (%p284) target = $region227
        $region224: #{tpu_custom_call.1} parent=219 // loop_body
          %v290 = vld [vmem:[%s288] sm:%s281]
          %291 = vst [vmem:[%s289] sm:%s281] %v290
        $region225: #{tpu_custom_call.1} parent=219 // loop_footer
          %s287 = sadd.s32 1, %s283
        $region226: #{tpu_custom_call.1} parent=219 // loop_footer_branch
          %282 = sbr.rel target = $region222
        $region227: #{tpu_custom_call.1} parent=219 // loop_exit
          _
      $region220: #{tpu_custom_call.1} parent=204 // pred_fallthru
        _
    $region205: #{tpu_custom_call.1} parent=1 // pred_fallthru
      _
    // Predicated region
    $region206: #{tpu_custom_call.1} parent=1 // pred_check
      _
    $region207: #{tpu_custom_call.1} parent=1 // pred_check_branch
      %265 = sbr.rel (0) target = $region209
    $region208: #{tpu_custom_call.1} parent=1 // pred_region
      %s267 = ssub.s32 2, 1
      loop: start=0, step=1, limit=1
      $region210: #{tpu_custom_call.1} parent=208 // loop_pre_header
        _
      $region211: #{tpu_custom_call.1} parent=208 // loop_header
        %s269 = sphi 0, %s273
        %p270 = scmp.ge.s32.totalorder %s269, 1
        %s274 = sphi %s260, %s260
        %s275 = sphi %s261, %s261
      $region212: #{tpu_custom_call.1} parent=208 // loop_header_branch
        %272 = sbr.rel (%p270) target = $region216
      $region213: #{tpu_custom_call.1} parent=208 // loop_body
        %v276 = vld [vmem:[%s274] sm:%s267]
        %277 = vst [vmem:[%s275] sm:%s267] %v276
      $region214: #{tpu_custom_call.1} parent=208 // loop_footer
        %s273 = sadd.s32 1, %s269
      $region215: #{tpu_custom_call.1} parent=208 // loop_footer_branch
        %268 = sbr.rel target = $region211
      $region216: #{tpu_custom_call.1} parent=208 // loop_exit
        _
    $region209: #{tpu_custom_call.1} parent=1 // pred_fallthru
      _
    // Predicated region
    $region228: #{tpu_custom_call.1} parent=1 // pred_check
      _
    $region229: #{tpu_custom_call.1} parent=1 // pred_check_branch
      %294 = sbr.rel (0) target = $region231
    $region230: #{tpu_custom_call.1} parent=1 // pred_region
      %295 = vsyncadd [#allocation3], 16
    $region231: #{tpu_custom_call.1} parent=1 // pred_fallthru
      _
    %s296 = sadd.s32 %s31, 7
    %s297 = sld [smem:[#allocation5 + %s296]]
    %s298 = scalar_lea.vmem %s2, %s297
    %s299 = scalar_lea.vmem [#allocation2], 7
    // Predicated region
    $region232: #{tpu_custom_call.1} parent=1 // pred_check
      _
    $region233: #{tpu_custom_call.1} parent=1 // pred_check_branch
      %301 = sbr.rel target = $region235
    $region234: #{tpu_custom_call.1} parent=1 // pred_region
      // Predicated region
      $region247: #{tpu_custom_call.1} parent=234 // pred_check
        _
      $region248: #{tpu_custom_call.1} parent=234 // pred_check_branch
        %317 = sbr.rel (0) target = $region250
      $region249: #{tpu_custom_call.1} parent=234 // pred_region
        %s319 = ssub.s32 2, 1
        loop: start=0, step=1, limit=1
        $region251: #{tpu_custom_call.1} parent=249 // loop_pre_header
          _
        $region252: #{tpu_custom_call.1} parent=249 // loop_header
          %s321 = sphi 0, %s325
          %p322 = scmp.ge.s32.totalorder %s321, 1
          %s326 = sphi %s298, %s298
          %s327 = sphi %s299, %s299
        $region253: #{tpu_custom_call.1} parent=249 // loop_header_branch
          %324 = sbr.rel (%p322) target = $region257
        $region254: #{tpu_custom_call.1} parent=249 // loop_body
          %v328 = vld [vmem:[%s326] sm:%s319]
          %329 = vst [vmem:[%s327] sm:%s319] %v328
        $region255: #{tpu_custom_call.1} parent=249 // loop_footer
          %s325 = sadd.s32 1, %s321
        $region256: #{tpu_custom_call.1} parent=249 // loop_footer_branch
          %320 = sbr.rel target = $region252
        $region257: #{tpu_custom_call.1} parent=249 // loop_exit
          _
      $region250: #{tpu_custom_call.1} parent=234 // pred_fallthru
        _
    $region235: #{tpu_custom_call.1} parent=1 // pred_fallthru
      _
    // Predicated region
    $region236: #{tpu_custom_call.1} parent=1 // pred_check
      _
    $region237: #{tpu_custom_call.1} parent=1 // pred_check_branch
      %303 = sbr.rel (0) target = $region239
    $region238: #{tpu_custom_call.1} parent=1 // pred_region
      %s305 = ssub.s32 2, 1
      loop: start=0, step=1, limit=1
      $region240: #{tpu_custom_call.1} parent=238 // loop_pre_header
        _
      $region241: #{tpu_custom_call.1} parent=238 // loop_header
        %s307 = sphi 0, %s311
        %p308 = scmp.ge.s32.totalorder %s307, 1
        %s312 = sphi %s298, %s298
        %s313 = sphi %s299, %s299
      $region242: #{tpu_custom_call.1} parent=238 // loop_header_branch
        %310 = sbr.rel (%p308) target = $region246
      $region243: #{tpu_custom_call.1} parent=238 // loop_body
        %v314 = vld [vmem:[%s312] sm:%s305]
        %315 = vst [vmem:[%s313] sm:%s305] %v314
      $region244: #{tpu_custom_call.1} parent=238 // loop_footer
        %s311 = sadd.s32 1, %s307
      $region245: #{tpu_custom_call.1} parent=238 // loop_footer_branch
        %306 = sbr.rel target = $region241
      $region246: #{tpu_custom_call.1} parent=238 // loop_exit
        _
    $region239: #{tpu_custom_call.1} parent=1 // pred_fallthru
      _
    // Predicated region
    $region258: #{tpu_custom_call.1} parent=1 // pred_check
      _
    $region259: #{tpu_custom_call.1} parent=1 // pred_check_branch
      %332 = sbr.rel (0) target = $region261
    $region260: #{tpu_custom_call.1} parent=1 // pred_region
      %333 = vsyncadd [#allocation3], 16
    $region261: #{tpu_custom_call.1} parent=1 // pred_fallthru
      _
    %s334 = sadd.s32 %s31, 8
    %s335 = sld [smem:[#allocation5 + %s334]]
    %s336 = scalar_lea.vmem %s2, %s335
    %s337 = scalar_lea.vmem [#allocation2], 8
    %s338 = scalar_lea.sflag [#allocation3], 1
    // Predicated region
    $region262: #{tpu_custom_call.1} parent=1 // pred_check
      _
    $region263: #{tpu_custom_call.1} parent=1 // pred_check_branch
      %340 = sbr.rel target = $region265
    $region264: #{tpu_custom_call.1} parent=1 // pred_region
      // Predicated region
      $region277: #{tpu_custom_call.1} parent=264 // pred_check
        _
      $region278: #{tpu_custom_call.1} parent=264 // pred_check_branch
        %356 = sbr.rel (0) target = $region280
      $region279: #{tpu_custom_call.1} parent=264 // pred_region
        %s358 = ssub.s32 2, 1
        loop: start=0, step=1, limit=1
        $region281: #{tpu_custom_call.1} parent=279 // loop_pre_header
          _
        $region282: #{tpu_custom_call.1} parent=279 // loop_header
          %s360 = sphi 0, %s364
          %p361 = scmp.ge.s32.totalorder %s360, 1
          %s365 = sphi %s336, %s336
          %s366 = sphi %s337, %s337
        $region283: #{tpu_custom_call.1} parent=279 // loop_header_branch
          %363 = sbr.rel (%p361) target = $region287
        $region284: #{tpu_custom_call.1} parent=279 // loop_body
          %v367 = vld [vmem:[%s365] sm:%s358]
          %368 = vst [vmem:[%s366] sm:%s358] %v367
        $region285: #{tpu_custom_call.1} parent=279 // loop_footer
          %s364 = sadd.s32 1, %s360
        $region286: #{tpu_custom_call.1} parent=279 // loop_footer_branch
          %359 = sbr.rel target = $region282
        $region287: #{tpu_custom_call.1} parent=279 // loop_exit
          _
      $region280: #{tpu_custom_call.1} parent=264 // pred_fallthru
        _
    $region265: #{tpu_custom_call.1} parent=1 // pred_fallthru
      _
    // Predicated region
    $region266: #{tpu_custom_call.1} parent=1 // pred_check
      _
    $region267: #{tpu_custom_call.1} parent=1 // pred_check_branch
      %342 = sbr.rel (0) target = $region269
    $region268: #{tpu_custom_call.1} parent=1 // pred_region
      %s344 = ssub.s32 2, 1
      loop: start=0, step=1, limit=1
      $region270: #{tpu_custom_call.1} parent=268 // loop_pre_header
        _
      $region271: #{tpu_custom_call.1} parent=268 // loop_header
        %s346 = sphi 0, %s350
        %p347 = scmp.ge.s32.totalorder %s346, 1
        %s351 = sphi %s336, %s336
        %s352 = sphi %s337, %s337
      $region272: #{tpu_custom_call.1} parent=268 // loop_header_branch
        %349 = sbr.rel (%p347) target = $region276
      $region273: #{tpu_custom_call.1} parent=268 // loop_body
        %v353 = vld [vmem:[%s351] sm:%s344]
        %354 = vst [vmem:[%s352] sm:%s344] %v353
      $region274: #{tpu_custom_call.1} parent=268 // loop_footer
        %s350 = sadd.s32 1, %s346
      $region275: #{tpu_custom_call.1} parent=268 // loop_footer_branch
        %345 = sbr.rel target = $region271
      $region276: #{tpu_custom_call.1} parent=268 // loop_exit
        _
    $region269: #{tpu_custom_call.1} parent=1 // pred_fallthru
      _
    // Predicated region
    $region288: #{tpu_custom_call.1} parent=1 // pred_check
      _
    $region289: #{tpu_custom_call.1} parent=1 // pred_check_branch
      %371 = sbr.rel (0) target = $region291
    $region290: #{tpu_custom_call.1} parent=1 // pred_region
      %372 = vsyncadd %s338, 16
    $region291: #{tpu_custom_call.1} parent=1 // pred_fallthru
      _
    %s373 = sadd.s32 %s31, 9
    %s374 = sld [smem:[#allocation5 + %s373]]
    %s375 = scalar_lea.vmem %s2, %s374
    %s376 = scalar_lea.vmem [#allocation2], 9
    // Predicated region
    $region292: #{tpu_custom_call.1} parent=1 // pred_check
      _
    $region293: #{tpu_custom_call.1} parent=1 // pred_check_branch
      %378 = sbr.rel target = $region295
    $region294: #{tpu_custom_call.1} parent=1 // pred_region
      // Predicated region
      $region307: #{tpu_custom_call.1} parent=294 // pred_check
        _
      $region308: #{tpu_custom_call.1} parent=294 // pred_check_branch
        %394 = sbr.rel (0) target = $region310
      $region309: #{tpu_custom_call.1} parent=294 // pred_region
        %s396 = ssub.s32 2, 1
        loop: start=0, step=1, limit=1
        $region311: #{tpu_custom_call.1} parent=309 // loop_pre_header
          _
        $region312: #{tpu_custom_call.1} parent=309 // loop_header
          %s398 = sphi 0, %s402
          %p399 = scmp.ge.s32.totalorder %s398, 1
          %s403 = sphi %s375, %s375
          %s404 = sphi %s376, %s376
        $region313: #{tpu_custom_call.1} parent=309 // loop_header_branch
          %401 = sbr.rel (%p399) target = $region317
        $region314: #{tpu_custom_call.1} parent=309 // loop_body
          %v405 = vld [vmem:[%s403] sm:%s396]
          %406 = vst [vmem:[%s404] sm:%s396] %v405
        $region315: #{tpu_custom_call.1} parent=309 // loop_footer
          %s402 = sadd.s32 1, %s398
        $region316: #{tpu_custom_call.1} parent=309 // loop_footer_branch
          %397 = sbr.rel target = $region312
        $region317: #{tpu_custom_call.1} parent=309 // loop_exit
          _
      $region310: #{tpu_custom_call.1} parent=294 // pred_fallthru
        _
    $region295: #{tpu_custom_call.1} parent=1 // pred_fallthru
      _
    // Predicated region
    $region296: #{tpu_custom_call.1} parent=1 // pred_check
      _
    $region297: #{tpu_custom_call.1} parent=1 // pred_check_branch
      %380 = sbr.rel (0) target = $region299
    $region298: #{tpu_custom_call.1} parent=1 // pred_region
      %s382 = ssub.s32 2, 1
      loop: start=0, step=1, limit=1
      $region300: #{tpu_custom_call.1} parent=298 // loop_pre_header
        _
      $region301: #{tpu_custom_call.1} parent=298 // loop_header
        %s384 = sphi 0, %s388
        %p385 = scmp.ge.s32.totalorder %s384, 1
        %s389 = sphi %s375, %s375
        %s390 = sphi %s376, %s376
      $region302: #{tpu_custom_call.1} parent=298 // loop_header_branch
        %387 = sbr.rel (%p385) target = $region306
      $region303: #{tpu_custom_call.1} parent=298 // loop_body
        %v391 = vld [vmem:[%s389] sm:%s382]
        %392 = vst [vmem:[%s390] sm:%s382] %v391
      $region304: #{tpu_custom_call.1} parent=298 // loop_footer
        %s388 = sadd.s32 1, %s384
      $region305: #{tpu_custom_call.1} parent=298 // loop_footer_branch
        %383 = sbr.rel target = $region301
      $region306: #{tpu_custom_call.1} parent=298 // loop_exit
        _
    $region299: #{tpu_custom_call.1} parent=1 // pred_fallthru
      _
    // Predicated region
    $region318: #{tpu_custom_call.1} parent=1 // pred_check
      _
    $region319: #{tpu_custom_call.1} parent=1 // pred_check_branch
      %409 = sbr.rel (0) target = $region321
    $region320: #{tpu_custom_call.1} parent=1 // pred_region
      %410 = vsyncadd %s338, 16
    $region321: #{tpu_custom_call.1} parent=1 // pred_fallthru
      _
    %s411 = sadd.s32 %s31, 10
    %s412 = sld [smem:[#allocation5 + %s411]]
    %s413 = scalar_lea.vmem %s2, %s412
    %s414 = scalar_lea.vmem [#allocation2], 10
    // Predicated region
    $region322: #{tpu_custom_call.1} parent=1 // pred_check
      _
    $region323: #{tpu_custom_call.1} parent=1 // pred_check_branch
      %416 = sbr.rel target = $region325
    $region324: #{tpu_custom_call.1} parent=1 // pred_region
      // Predicated region
      $region337: #{tpu_custom_call.1} parent=324 // pred_check
        _
      $region338: #{tpu_custom_call.1} parent=324 // pred_check_branch
        %432 = sbr.rel (0) target = $region340
      $region339: #{tpu_custom_call.1} parent=324 // pred_region
        %s434 = ssub.s32 2, 1
        loop: start=0, step=1, limit=1
        $region341: #{tpu_custom_call.1} parent=339 // loop_pre_header
          _
        $region342: #{tpu_custom_call.1} parent=339 // loop_header
          %s436 = sphi 0, %s440
          %p437 = scmp.ge.s32.totalorder %s436, 1
          %s441 = sphi %s413, %s413
          %s442 = sphi %s414, %s414
        $region343: #{tpu_custom_call.1} parent=339 // loop_header_branch
          %439 = sbr.rel (%p437) target = $region347
        $region344: #{tpu_custom_call.1} parent=339 // loop_body
          %v443 = vld [vmem:[%s441] sm:%s434]
          %444 = vst [vmem:[%s442] sm:%s434] %v443
        $region345: #{tpu_custom_call.1} parent=339 // loop_footer
          %s440 = sadd.s32 1, %s436
        $region346: #{tpu_custom_call.1} parent=339 // loop_footer_branch
          %435 = sbr.rel target = $region342
        $region347: #{tpu_custom_call.1} parent=339 // loop_exit
          _
      $region340: #{tpu_custom_call.1} parent=324 // pred_fallthru
        _
    $region325: #{tpu_custom_call.1} parent=1 // pred_fallthru
      _
    // Predicated region
    $region326: #{tpu_custom_call.1} parent=1 // pred_check
      _
    $region327: #{tpu_custom_call.1} parent=1 // pred_check_branch
      %418 = sbr.rel (0) target = $region329
    $region328: #{tpu_custom_call.1} parent=1 // pred_region
      %s420 = ssub.s32 2, 1
      loop: start=0, step=1, limit=1
      $region330: #{tpu_custom_call.1} parent=328 // loop_pre_header
        _
      $region331: #{tpu_custom_call.1} parent=328 // loop_header
        %s422 = sphi 0, %s426
        %p423 = scmp.ge.s32.totalorder %s422, 1
        %s427 = sphi %s413, %s413
        %s428 = sphi %s414, %s414
      $region332: #{tpu_custom_call.1} parent=328 // loop_header_branch
        %425 = sbr.rel (%p423) target = $region336
      $region333: #{tpu_custom_call.1} parent=328 // loop_body
        %v429 = vld [vmem:[%s427] sm:%s420]
        %430 = vst [vmem:[%s428] sm:%s420] %v429
      $region334: #{tpu_custom_call.1} parent=328 // loop_footer
        %s426 = sadd.s32 1, %s422
      $region335: #{tpu_custom_call.1} parent=328 // loop_footer_branch
        %421 = sbr.rel target = $region331
      $region336: #{tpu_custom_call.1} parent=328 // loop_exit
        _
    $region329: #{tpu_custom_call.1} parent=1 // pred_fallthru
      _
    // Predicated region
    $region348: #{tpu_custom_call.1} parent=1 // pred_check
      _
    $region349: #{tpu_custom_call.1} parent=1 // pred_check_branch
      %447 = sbr.rel (0) target = $region351
    $region350: #{tpu_custom_call.1} parent=1 // pred_region
      %448 = vsyncadd %s338, 16
    $region351: #{tpu_custom_call.1} parent=1 // pred_fallthru
      _
    %s449 = sadd.s32 %s31, 11
    %s450 = sld [smem:[#allocation5 + %s449]]
    %s451 = scalar_lea.vmem %s2, %s450
    %s452 = scalar_lea.vmem [#allocation2], 11
    // Predicated region
    $region352: #{tpu_custom_call.1} parent=1 // pred_check
      _
    $region353: #{tpu_custom_call.1} parent=1 // pred_check_branch
      %454 = sbr.rel target = $region355
    $region354: #{tpu_custom_call.1} parent=1 // pred_region
      // Predicated region
      $region367: #{tpu_custom_call.1} parent=354 // pred_check
        _
      $region368: #{tpu_custom_call.1} parent=354 // pred_check_branch
        %470 = sbr.rel (0) target = $region370
      $region369: #{tpu_custom_call.1} parent=354 // pred_region
        %s472 = ssub.s32 2, 1
        loop: start=0, step=1, limit=1
        $region371: #{tpu_custom_call.1} parent=369 // loop_pre_header
          _
        $region372: #{tpu_custom_call.1} parent=369 // loop_header
          %s474 = sphi 0, %s478
          %p475 = scmp.ge.s32.totalorder %s474, 1
          %s479 = sphi %s451, %s451
          %s480 = sphi %s452, %s452
        $region373: #{tpu_custom_call.1} parent=369 // loop_header_branch
          %477 = sbr.rel (%p475) target = $region377
        $region374: #{tpu_custom_call.1} parent=369 // loop_body
          %v481 = vld [vmem:[%s479] sm:%s472]
          %482 = vst [vmem:[%s480] sm:%s472] %v481
        $region375: #{tpu_custom_call.1} parent=369 // loop_footer
          %s478 = sadd.s32 1, %s474
        $region376: #{tpu_custom_call.1} parent=369 // loop_footer_branch
          %473 = sbr.rel target = $region372
        $region377: #{tpu_custom_call.1} parent=369 // loop_exit
          _
      $region370: #{tpu_custom_call.1} parent=354 // pred_fallthru
        _
    $region355: #{tpu_custom_call.1} parent=1 // pred_fallthru
      _
    // Predicated region
    $region356: #{tpu_custom_call.1} parent=1 // pred_check
      _
    $region357: #{tpu_custom_call.1} parent=1 // pred_check_branch
      %456 = sbr.rel (0) target = $region359
    $region358: #{tpu_custom_call.1} parent=1 // pred_region
      %s458 = ssub.s32 2, 1
      loop: start=0, step=1, limit=1
      $region360: #{tpu_custom_call.1} parent=358 // loop_pre_header
        _
      $region361: #{tpu_custom_call.1} parent=358 // loop_header
        %s460 = sphi 0, %s464
        %p461 = scmp.ge.s32.totalorder %s460, 1
        %s465 = sphi %s451, %s451
        %s466 = sphi %s452, %s452
      $region362: #{tpu_custom_call.1} parent=358 // loop_header_branch
        %463 = sbr.rel (%p461) target = $region366
      $region363: #{tpu_custom_call.1} parent=358 // loop_body
        %v467 = vld [vmem:[%s465] sm:%s458]
        %468 = vst [vmem:[%s466] sm:%s458] %v467
      $region364: #{tpu_custom_call.1} parent=358 // loop_footer
        %s464 = sadd.s32 1, %s460
      $region365: #{tpu_custom_call.1} parent=358 // loop_footer_branch
        %459 = sbr.rel target = $region361
      $region366: #{tpu_custom_call.1} parent=358 // loop_exit
        _
    $region359: #{tpu_custom_call.1} parent=1 // pred_fallthru
      _
    // Predicated region
    $region378: #{tpu_custom_call.1} parent=1 // pred_check
      _
    $region379: #{tpu_custom_call.1} parent=1 // pred_check_branch
      %485 = sbr.rel (0) target = $region381
    $region380: #{tpu_custom_call.1} parent=1 // pred_region
      %486 = vsyncadd %s338, 16
    $region381: #{tpu_custom_call.1} parent=1 // pred_fallthru
      _
    %s487 = sadd.s32 %s31, 12
    %s488 = sld [smem:[#allocation5 + %s487]]
    %s489 = scalar_lea.vmem %s2, %s488
    %s490 = scalar_lea.vmem [#allocation2], 12
    // Predicated region
    $region382: #{tpu_custom_call.1} parent=1 // pred_check
      _
    $region383: #{tpu_custom_call.1} parent=1 // pred_check_branch
      %492 = sbr.rel target = $region385
    $region384: #{tpu_custom_call.1} parent=1 // pred_region
      // Predicated region
      $region397: #{tpu_custom_call.1} parent=384 // pred_check
        _
      $region398: #{tpu_custom_call.1} parent=384 // pred_check_branch
        %508 = sbr.rel (0) target = $region400
      $region399: #{tpu_custom_call.1} parent=384 // pred_region
        %s510 = ssub.s32 2, 1
        loop: start=0, step=1, limit=1
        $region401: #{tpu_custom_call.1} parent=399 // loop_pre_header
          _
        $region402: #{tpu_custom_call.1} parent=399 // loop_header
          %s512 = sphi 0, %s516
          %p513 = scmp.ge.s32.totalorder %s512, 1
          %s517 = sphi %s489, %s489
          %s518 = sphi %s490, %s490
        $region403: #{tpu_custom_call.1} parent=399 // loop_header_branch
          %515 = sbr.rel (%p513) target = $region407
        $region404: #{tpu_custom_call.1} parent=399 // loop_body
          %v519 = vld [vmem:[%s517] sm:%s510]
          %520 = vst [vmem:[%s518] sm:%s510] %v519
        $region405: #{tpu_custom_call.1} parent=399 // loop_footer
          %s516 = sadd.s32 1, %s512
        $region406: #{tpu_custom_call.1} parent=399 // loop_footer_branch
          %511 = sbr.rel target = $region402
        $region407: #{tpu_custom_call.1} parent=399 // loop_exit
          _
      $region400: #{tpu_custom_call.1} parent=384 // pred_fallthru
        _
    $region385: #{tpu_custom_call.1} parent=1 // pred_fallthru
      _
    // Predicated region
    $region386: #{tpu_custom_call.1} parent=1 // pred_check
      _
    $region387: #{tpu_custom_call.1} parent=1 // pred_check_branch
      %494 = sbr.rel (0) target = $region389
    $region388: #{tpu_custom_call.1} parent=1 // pred_region
      %s496 = ssub.s32 2, 1
      loop: start=0, step=1, limit=1
      $region390: #{tpu_custom_call.1} parent=388 // loop_pre_header
        _
      $region391: #{tpu_custom_call.1} parent=388 // loop_header
        %s498 = sphi 0, %s502
        %p499 = scmp.ge.s32.totalorder %s498, 1
        %s503 = sphi %s489, %s489
        %s504 = sphi %s490, %s490
      $region392: #{tpu_custom_call.1} parent=388 // loop_header_branch
        %501 = sbr.rel (%p499) target = $region396
      $region393: #{tpu_custom_call.1} parent=388 // loop_body
        %v505 = vld [vmem:[%s503] sm:%s496]
        %506 = vst [vmem:[%s504] sm:%s496] %v505
      $region394: #{tpu_custom_call.1} parent=388 // loop_footer
        %s502 = sadd.s32 1, %s498
      $region395: #{tpu_custom_call.1} parent=388 // loop_footer_branch
        %497 = sbr.rel target = $region391
      $region396: #{tpu_custom_call.1} parent=388 // loop_exit
        _
    $region389: #{tpu_custom_call.1} parent=1 // pred_fallthru
      _
    // Predicated region
    $region408: #{tpu_custom_call.1} parent=1 // pred_check
      _
    $region409: #{tpu_custom_call.1} parent=1 // pred_check_branch
      %523 = sbr.rel (0) target = $region411
    $region410: #{tpu_custom_call.1} parent=1 // pred_region
      %524 = vsyncadd %s338, 16
    $region411: #{tpu_custom_call.1} parent=1 // pred_fallthru
      _
    %s525 = sadd.s32 %s31, 13
    %s526 = sld [smem:[#allocation5 + %s525]]
    %s527 = scalar_lea.vmem %s2, %s526
    %s528 = scalar_lea.vmem [#allocation2], 13
    // Predicated region
    $region412: #{tpu_custom_call.1} parent=1 // pred_check
      _
    $region413: #{tpu_custom_call.1} parent=1 // pred_check_branch
      %530 = sbr.rel target = $region415
    $region414: #{tpu_custom_call.1} parent=1 // pred_region
      // Predicated region
      $region427: #{tpu_custom_call.1} parent=414 // pred_check
        _
      $region428: #{tpu_custom_call.1} parent=414 // pred_check_branch
        %546 = sbr.rel (0) target = $region430
      $region429: #{tpu_custom_call.1} parent=414 // pred_region
        %s548 = ssub.s32 2, 1
        loop: start=0, step=1, limit=1
        $region431: #{tpu_custom_call.1} parent=429 // loop_pre_header
          _
        $region432: #{tpu_custom_call.1} parent=429 // loop_header
          %s550 = sphi 0, %s554
          %p551 = scmp.ge.s32.totalorder %s550, 1
          %s555 = sphi %s527, %s527
          %s556 = sphi %s528, %s528
        $region433: #{tpu_custom_call.1} parent=429 // loop_header_branch
          %553 = sbr.rel (%p551) target = $region437
        $region434: #{tpu_custom_call.1} parent=429 // loop_body
          %v557 = vld [vmem:[%s555] sm:%s548]
          %558 = vst [vmem:[%s556] sm:%s548] %v557
        $region435: #{tpu_custom_call.1} parent=429 // loop_footer
          %s554 = sadd.s32 1, %s550
        $region436: #{tpu_custom_call.1} parent=429 // loop_footer_branch
          %549 = sbr.rel target = $region432
        $region437: #{tpu_custom_call.1} parent=429 // loop_exit
          _
      $region430: #{tpu_custom_call.1} parent=414 // pred_fallthru
        _
    $region415: #{tpu_custom_call.1} parent=1 // pred_fallthru
      _
    // Predicated region
    $region416: #{tpu_custom_call.1} parent=1 // pred_check
      _
    $region417: #{tpu_custom_call.1} parent=1 // pred_check_branch
      %532 = sbr.rel (0) target = $region419
    $region418: #{tpu_custom_call.1} parent=1 // pred_region
      %s534 = ssub.s32 2, 1
      loop: start=0, step=1, limit=1
      $region420: #{tpu_custom_call.1} parent=418 // loop_pre_header
        _
      $region421: #{tpu_custom_call.1} parent=418 // loop_header
        %s536 = sphi 0, %s540
        %p537 = scmp.ge.s32.totalorder %s536, 1
        %s541 = sphi %s527, %s527
        %s542 = sphi %s528, %s528
      $region422: #{tpu_custom_call.1} parent=418 // loop_header_branch
        %539 = sbr.rel (%p537) target = $region426
      $region423: #{tpu_custom_call.1} parent=418 // loop_body
        %v543 = vld [vmem:[%s541] sm:%s534]
        %544 = vst [vmem:[%s542] sm:%s534] %v543
      $region424: #{tpu_custom_call.1} parent=418 // loop_footer
        %s540 = sadd.s32 1, %s536
      $region425: #{tpu_custom_call.1} parent=418 // loop_footer_branch
        %535 = sbr.rel target = $region421
      $region426: #{tpu_custom_call.1} parent=418 // loop_exit
        _
    $region419: #{tpu_custom_call.1} parent=1 // pred_fallthru
      _
    // Predicated region
    $region438: #{tpu_custom_call.1} parent=1 // pred_check
      _
    $region439: #{tpu_custom_call.1} parent=1 // pred_check_branch
      %561 = sbr.rel (0) target = $region441
    $region440: #{tpu_custom_call.1} parent=1 // pred_region
      %562 = vsyncadd %s338, 16
    $region441: #{tpu_custom_call.1} parent=1 // pred_fallthru
      _
    %s563 = sadd.s32 %s31, 14
    %s564 = sld [smem:[#allocation5 + %s563]]
    %s565 = scalar_lea.vmem %s2, %s564
    %s566 = scalar_lea.vmem [#allocation2], 14
    // Predicated region
    $region442: #{tpu_custom_call.1} parent=1 // pred_check
      _
    $region443: #{tpu_custom_call.1} parent=1 // pred_check_branch
      %568 = sbr.rel target = $region445
    $region444: #{tpu_custom_call.1} parent=1 // pred_region
      // Predicated region
      $region457: #{tpu_custom_call.1} parent=444 // pred_check
        _
      $region458: #{tpu_custom_call.1} parent=444 // pred_check_branch
        %584 = sbr.rel (0) target = $region460
      $region459: #{tpu_custom_call.1} parent=444 // pred_region
        %s586 = ssub.s32 2, 1
        loop: start=0, step=1, limit=1
        $region461: #{tpu_custom_call.1} parent=459 // loop_pre_header
          _
        $region462: #{tpu_custom_call.1} parent=459 // loop_header
          %s588 = sphi 0, %s592
          %p589 = scmp.ge.s32.totalorder %s588, 1
          %s593 = sphi %s565, %s565
          %s594 = sphi %s566, %s566
        $region463: #{tpu_custom_call.1} parent=459 // loop_header_branch
          %591 = sbr.rel (%p589) target = $region467
        $region464: #{tpu_custom_call.1} parent=459 // loop_body
          %v595 = vld [vmem:[%s593] sm:%s586]
          %596 = vst [vmem:[%s594] sm:%s586] %v595
        $region465: #{tpu_custom_call.1} parent=459 // loop_footer
          %s592 = sadd.s32 1, %s588
        $region466: #{tpu_custom_call.1} parent=459 // loop_footer_branch
          %587 = sbr.rel target = $region462
        $region467: #{tpu_custom_call.1} parent=459 // loop_exit
          _
      $region460: #{tpu_custom_call.1} parent=444 // pred_fallthru
        _
    $region445: #{tpu_custom_call.1} parent=1 // pred_fallthru
      _
    // Predicated region
    $region446: #{tpu_custom_call.1} parent=1 // pred_check
      _
    $region447: #{tpu_custom_call.1} parent=1 // pred_check_branch
      %570 = sbr.rel (0) target = $region449
    $region448: #{tpu_custom_call.1} parent=1 // pred_region
      %s572 = ssub.s32 2, 1
      loop: start=0, step=1, limit=1
      $region450: #{tpu_custom_call.1} parent=448 // loop_pre_header
        _
      $region451: #{tpu_custom_call.1} parent=448 // loop_header
        %s574 = sphi 0, %s578
        %p575 = scmp.ge.s32.totalorder %s574, 1
        %s579 = sphi %s565, %s565
        %s580 = sphi %s566, %s566
      $region452: #{tpu_custom_call.1} parent=448 // loop_header_branch
        %577 = sbr.rel (%p575) target = $region456
      $region453: #{tpu_custom_call.1} parent=448 // loop_body
        %v581 = vld [vmem:[%s579] sm:%s572]
        %582 = vst [vmem:[%s580] sm:%s572] %v581
      $region454: #{tpu_custom_call.1} parent=448 // loop_footer
        %s578 = sadd.s32 1, %s574
      $region455: #{tpu_custom_call.1} parent=448 // loop_footer_branch
        %573 = sbr.rel target = $region451
      $region456: #{tpu_custom_call.1} parent=448 // loop_exit
        _
    $region449: #{tpu_custom_call.1} parent=1 // pred_fallthru
      _
    // Predicated region
    $region468: #{tpu_custom_call.1} parent=1 // pred_check
      _
    $region469: #{tpu_custom_call.1} parent=1 // pred_check_branch
      %599 = sbr.rel (0) target = $region471
    $region470: #{tpu_custom_call.1} parent=1 // pred_region
      %600 = vsyncadd %s338, 16
    $region471: #{tpu_custom_call.1} parent=1 // pred_fallthru
      _
    %s601 = sadd.s32 %s31, 15
    %s602 = sld [smem:[#allocation5 + %s601]]
    %s603 = scalar_lea.vmem %s2, %s602
    %s604 = scalar_lea.vmem [#allocation2], 15
    // Predicated region
    $region472: #{tpu_custom_call.1} parent=1 // pred_check
      _
    $region473: #{tpu_custom_call.1} parent=1 // pred_check_branch
      %606 = sbr.rel target = $region475
    $region474: #{tpu_custom_call.1} parent=1 // pred_region
      // Predicated region
      $region487: #{tpu_custom_call.1} parent=474 // pred_check
        _
      $region488: #{tpu_custom_call.1} parent=474 // pred_check_branch
        %622 = sbr.rel (0) target = $region490
      $region489: #{tpu_custom_call.1} parent=474 // pred_region
        %s624 = ssub.s32 2, 1
        loop: start=0, step=1, limit=1
        $region491: #{tpu_custom_call.1} parent=489 // loop_pre_header
          _
        $region492: #{tpu_custom_call.1} parent=489 // loop_header
          %s626 = sphi 0, %s630
          %p627 = scmp.ge.s32.totalorder %s626, 1
          %s631 = sphi %s603, %s603
          %s632 = sphi %s604, %s604
        $region493: #{tpu_custom_call.1} parent=489 // loop_header_branch
          %629 = sbr.rel (%p627) target = $region497
        $region494: #{tpu_custom_call.1} parent=489 // loop_body
          %v633 = vld [vmem:[%s631] sm:%s624]
          %634 = vst [vmem:[%s632] sm:%s624] %v633
        $region495: #{tpu_custom_call.1} parent=489 // loop_footer
          %s630 = sadd.s32 1, %s626
        $region496: #{tpu_custom_call.1} parent=489 // loop_footer_branch
          %625 = sbr.rel target = $region492
        $region497: #{tpu_custom_call.1} parent=489 // loop_exit
          _
      $region490: #{tpu_custom_call.1} parent=474 // pred_fallthru
        _
    $region475: #{tpu_custom_call.1} parent=1 // pred_fallthru
      _
    // Predicated region
    $region476: #{tpu_custom_call.1} parent=1 // pred_check
      _
    $region477: #{tpu_custom_call.1} parent=1 // pred_check_branch
      %608 = sbr.rel (0) target = $region479
    $region478: #{tpu_custom_call.1} parent=1 // pred_region
      %s610 = ssub.s32 2, 1
      loop: start=0, step=1, limit=1
      $region480: #{tpu_custom_call.1} parent=478 // loop_pre_header
        _
      $region481: #{tpu_custom_call.1} parent=478 // loop_header
        %s612 = sphi 0, %s616
        %p613 = scmp.ge.s32.totalorder %s612, 1
        %s617 = sphi %s603, %s603
        %s618 = sphi %s604, %s604
      $region482: #{tpu_custom_call.1} parent=478 // loop_header_branch
        %615 = sbr.rel (%p613) target = $region486
      $region483: #{tpu_custom_call.1} parent=478 // loop_body
        %v619 = vld [vmem:[%s617] sm:%s610]
        %620 = vst [vmem:[%s618] sm:%s610] %v619
      $region484: #{tpu_custom_call.1} parent=478 // loop_footer
        %s616 = sadd.s32 1, %s612
      $region485: #{tpu_custom_call.1} parent=478 // loop_footer_branch
        %611 = sbr.rel target = $region481
      $region486: #{tpu_custom_call.1} parent=478 // loop_exit
        _
    $region479: #{tpu_custom_call.1} parent=1 // pred_fallthru
      _
    // Predicated region
    $region498: #{tpu_custom_call.1} parent=1 // pred_check
      _
    $region499: #{tpu_custom_call.1} parent=1 // pred_check_branch
      %637 = sbr.rel (0) target = $region501
    $region500: #{tpu_custom_call.1} parent=1 // pred_region
      %638 = vsyncadd %s338, 16
    $region501: #{tpu_custom_call.1} parent=1 // pred_fallthru
      _
    %v639 = vld [vmem:[%s5] sm:$0x1]
    %v640 = vld [vmem:[%s6] sm:$0x1]
    %v641 = vld [vmem:[%s4] sm:$0x3]
    %s642 = smul.u32 8, 1
    %s643 = sshll.u32 %s642, 4
    %644 = dma.done [#allocation3], %s643
    %v645 = vld [vmem:[#allocation2] sm:$0xff]
    %v646 = vld [vmem:[%s3] sm:$0xff]
    %v647 = vld [vmem:[%s1] sm:$0xff]
    %vm648 = vcmp.eq.s32.totalorder %v647, 0
    %v649 = vsel %vm648, 1, 0
    %650 = vset.pattern.permute.xlu0 0
    %651 = vperm.xlu0 %650, %v649
    %v652 = vpop.permute.xlu0 %651
    %vm653 = vcmp.eq.s32.totalorder %v652, 1
    %v654 = vperm.slane %v641, 0
    %v655 = vperm.slane %v641, 1
    %v656 = vsel %vm653, %v654, %v655
    %v657 = vadd.f32 %v645, %v646
    %v658 = vadd.f32 %v657, %v656
    %vm659 = vcmask 261120
    %v660 = vsel %vm659, %v658, 0.0
    %661 = vadd.xlane.f32.xlu0 %v660
    %v662 = vpop.xlane.xlu0 %661
    %v663 = vrcp.pop 32.0
    %v664 = vmul.f32 32.0, %v663
    %v665 = vsub.f32 1.0, %v664
    %v666 = vmul.f32 %v663, %v665
    %v667 = vadd.f32 %v663, %v666
    %vm668 = vweird.f32 %v663
    %v669 = vsel %vm668, %v663, %v667
    %v670 = vmul.f32 %v662, %v669
    %v671 = vsub.f32 %v658, %v670
    %v672 = vmul.f32 %v671, %v671
    %v673 = vsel %vm659, %v672, 0.0
    %674 = vadd.xlane.f32.xlu0 %v673
    %v675 = vpop.xlane.xlu0 %674
    %v676 = vmul.f32 %v675, %v669
    %v677 = vadd.f32 %v676, 1e-12
    %v678 = vrsqrt.pop %v677
    %v679 = vmul.f32 %v678, %v677
    %v680 = vmul.f32 %v679, %v678
    %v681 = vmul.f32 0.5, %v680
    %v682 = vsub.f32 1.5, %v681
    %v683 = vmul.f32 %v678, %v682
    %vm684 = vweird.f32 %v677
    %vm685 = vweird.f32 %v678
    %vm686 = vmor %vm684, %vm685
    %v687 = vsel %vm686, %v678, %v683
    %v688 = vmul.f32 %v671, %v687
    %v690 = vperm.slane %v639, 0
    %v692 = vmul.f32 %v688, %v690
    %v694 = vperm.slane %v640, 0
    %v696 = vadd.f32 %v692, %v694
    %697 = vst.msk [vmem:[#allocation6] sm:$0xff] %vm659, %v696
    %s698 = sshll.u32 %s642, 4
    %699 = dma.done %s338, %s698
    %v700 = vld [vmem:[#allocation2 + $0x8] sm:$0xff]
    %v701 = vld [vmem:[%s3 + $0x8] sm:$0xff]
    %v702 = vld [vmem:[%s1 + $0x8] sm:$0xff]
    %vm703 = vcmp.eq.s32.totalorder %v702, 0
    %v704 = vsel %vm703, 1, 0
    %705 = vset.pattern.permute.xlu0 0
    %706 = vperm.xlu0 %705, %v704
    %v707 = vpop.permute.xlu0 %706
    %vm708 = vcmp.eq.s32.totalorder %v707, 1
    %v709 = vsel %vm708, %v654, %v655
    %v710 = vadd.f32 %v700, %v701
    %v711 = vadd.f32 %v710, %v709
    %v712 = vsel %vm659, %v711, 0.0
    %713 = vadd.xlane.f32.xlu0 %v712
    %v714 = vpop.xlane.xlu0 %713
    %v715 = vmul.f32 %v714, %v669
    %v716 = vsub.f32 %v711, %v715
    %v717 = vmul.f32 %v716, %v716
    %v718 = vsel %vm659, %v717, 0.0
    %719 = vadd.xlane.f32.xlu0 %v718
    %v720 = vpop.xlane.xlu0 %719
    %v721 = vmul.f32 %v720, %v669
    %v722 = vadd.f32 %v721, 1e-12
    %v723 = vrsqrt.pop %v722
    %v724 = vmul.f32 %v723, %v722
    %v725 = vmul.f32 %v724, %v723
    %v726 = vmul.f32 0.5, %v725
    %v727 = vsub.f32 1.5, %v726
    %v728 = vmul.f32 %v723, %v727
    %vm729 = vweird.f32 %v722
    %vm730 = vweird.f32 %v723
    %vm731 = vmor %vm729, %vm730
    %v732 = vsel %vm731, %v723, %v728
    %v733 = vmul.f32 %v716, %v732
    %v734 = vmul.f32 %v733, %v690
    %v735 = vadd.f32 %v734, %v694
    %736 = vst.msk [vmem:[#allocation6 + $0x8] sm:$0xff] %vm659, %v735
    // Predicated region
    $region502: #{tpu_custom_call.1} parent=1 // pred_check
      _
    $region503: #{tpu_custom_call.1} parent=1 // pred_check_branch
      %738 = sbr.rel (0) target = $region505
    $region504: #{tpu_custom_call.1} parent=1 // pred_region
      %740 = vsyncadd [#allocation7], 0
      %s741 = sshll.u32 [#allocation6], 4
      %s742 = int_to_ptr.vmem [resolvable:$true] %s741
      %s743 = sshll.u32 %s7, 4
      %s744 = int_to_ptr.hbm [resolvable:$true] %s743
      %749 = dma.vmem_to_hbm [thread:$0]  %s742, 256, %s744, [#allocation7], 128, 128, 8
    $region505: #{tpu_custom_call.1} parent=1 // pred_fallthru
      _
    // Predicated region
    $region506: #{tpu_custom_call.1} parent=1 // pred_check
      _
    $region507: #{tpu_custom_call.1} parent=1 // pred_check_branch
      %751 = sbr.rel (0) target = $region509
    $region508: #{tpu_custom_call.1} parent=1 // pred_region
      %753 = dma.done [#allocation7], 256
    $region509: #{tpu_custom_call.1} parent=1 // pred_fallthru
      _
    %754 = vsyncpa [#allocation7], 1
  %755 = vsyncmov [#allocation3]
  %s756 = vpop.sfrf %755
  %p757 = scmp.eq.s32.totalorder %s756, 0
  %p758 = pneg %p757
  %760 = shalt.err (%p758)
  %s761 = scalar_lea.sflag [#allocation3], 1
  %762 = vsyncmov %s761
  %s763 = vpop.sfrf %762
  %p764 = scmp.eq.s32.totalorder %s763, 0
  %p765 = pneg %p764
  %767 = shalt.err (%p765)

</llo_original>
